<compile_context>
chip_gen: v7x
topology: tpu7x:2x2x1
jax: 0.10.0
libtpu: 0.0.40
codegen_flags: <defaults>
</compile_context>

<pallas_src>
import math

import jax
import jax.numpy as jnp
from jax.experimental import pallas as pl
from jax.experimental.pallas import tpu as pltpu


def _round_up(x, m):
    return ((x + m - 1) // m) * m


def _lcm(a, b):
    return a * b // math.gcd(a, b)


def _vmem_capacity_bytes():
    # Generation-aware VMEM budget (v7x: 64 MiB / TC, v5e/v6e: 128 MiB).
    try:
        return int(pltpu.get_tpu_info().vmem_capacity_bytes)
    except Exception:
        return 64 << 20          # conservative fallback = v7x size


# --------------------------------------------------------------------------- #
# Main path: fused stencil kernel (stride == 1, odd kernel size)
# --------------------------------------------------------------------------- #
def _make_stencil_kernel(*, tbg, C, N, k, W, pad, chunks, use_mxu, out_dtype):
    """Build the per-block kernel; all sizes are Python constants (unrolled)."""

    def kernel(x_ref, m_ref, w_ref, b_ref, o_ref):
        # x_ref: (tbg*C, L)    activations (compute dtype), flattened + padded
        # m_ref: (k, Lm)       per-kw column-validity masks (0/1, compute dtype)
        # w_ref: (N, C*k*k)    filter bank, K ordered (kw, kh, c), VMEM resident
        # b_ref: (N, 1)        f32 bias
        # o_ref: (tbg*N, S)    lane-dense output
        bias = b_ref[...]                                    # (N, 1) f32
        wmat = w_ref[...]                                    # (N, K)
        if not use_mxu:
            wmat = wmat.astype(jnp.float32)

        for g in range(tbg):
            r0, q0 = g * C, g * N
            for (s0, cs) in chunks:                          # bound vreg pressure
                ext = (k - 1) * W + cs
                if use_mxu:
                    # Assemble all C*k*k taps as a (K, cs) matrix (constant-offset
                    # lane slices + sublane concat) and do ONE MXU matmul.
                    pieces = []
                    for kw in range(k):
                        xs = x_ref[r0:r0 + C, kw + s0:kw + s0 + ext]   # (C, ext)
                        zm = xs if kw == pad else xs * m_ref[kw:kw + 1, s0:s0 + ext]
                        for kh in range(k):
                            pieces.append(zm[:, kh * W:kh * W + cs])
                    taps = jnp.concatenate(pieces, axis=0)             # (K, cs)
                    acc = jnp.dot(wmat, taps,
                                  preferred_element_type=jnp.float32)  # (N, cs)
                else:
                    # VPU stencil: n_basis packed on sublanes -> single (N, cs)
                    # f32 accumulator, broadcast FMAs from the VMEM weight matrix.
                    acc = jnp.zeros((N, cs), jnp.float32)
                    for kw in range(k):
                        xs = x_ref[r0:r0 + C, kw + s0:kw + s0 + ext]   # (C, ext)
                        zm = xs if kw == pad else xs * m_ref[kw:kw + 1, s0:s0 + ext]
                        zm = zm.astype(jnp.float32)      # per-(g,kw) upcast only
                        for kh in range(k):
                            tap = zm[:, kh * W:kh * W + cs]            # (C, cs)
                            for c in range(C):
                                j = (kw * k + kh) * C + c
                                acc = acc + wmat[:, j:j + 1] * tap[c:c + 1, :]
                o_ref[q0:q0 + N, s0:s0 + cs] = (acc + bias).astype(out_dtype)

    return kernel


def _conv_basis_stride1(x, weight, bias, *, basis_size, compute_dtype):
    B, Cin, H, W = x.shape
    N, C, k, _ = weight.shape
    G = Cin // basis_size
    BG = B * G
    pad = k // 2
    Ho, Wo = H, W                       # stride 1, odd k, padding k // 2
    S = Ho * Wo
    Hp = H + 2 * pad
    L = Hp * W + 2 * pad                # flattened padded spatial length
    Lm = (k - 1) * W + S                # extent of one pre-masked per-kw slice
    out_dtype = x.dtype
    in_itemsize = jnp.dtype(compute_dtype).itemsize
    out_itemsize = jnp.dtype(out_dtype).itemsize

    # ---- compute formulation: MXU matmul over K = C*k*k for realistic banks,
    #      sublane-packed VPU stencil for tiny ones.  Deep channel groups always
    #      go to the MXU so the fully unrolled tap loop stays small.
    use_mxu = (C * k * k >= 64 and N >= 8) or C > 16

    # ---- spatial chunking inside the kernel bounds accumulator vreg pressure.
    s_chunk = S
    if N * S * 4 > (64 << 10):
        s_chunk = min(S, max(256, ((64 << 10) // (N * 4)) // 128 * 128))
    chunks = tuple((s0, min(s_chunk, S - s0)) for s0 in range(0, S, s_chunk))

    # ---- block sizing: MB-scale blocks, generation-aware VMEM budget.
    vmem = _vmem_capacity_bytes()
    align = _lcm(8 // math.gcd(C, 8), 8 // math.gcd(N, 8))   # dense sublane blocks
    per_g = max(C * L * in_itemsize, N * S * out_itemsize)
    blk_budget = min(vmem // 6, 8 << 20)                     # x2 double buffering
    body_stmts = len(chunks) * (k * k * (1 if use_mxu else C) + 2 * k)
    tbg = max(1, min(blk_budget // per_g, max(1, 4096 // body_stmts)))
    tbg = max(align, (tbg // align) * align)
    tbg = min(tbg, _round_up(BG, align))
    # Prefer an EVEN number of grid steps (v7x shards the parallel axis over two
    # TensorCores); shrink the tile rather than padding extra work.
    steps = -(-BG // tbg)
    if steps > 1 and steps % 2 == 1:
        for cand in range(tbg - align, 0, -align):
            if (-(-BG // cand)) % 2 == 0:
                tbg = cand
                break
    BG_pad = _round_up(BG, tbg)
    grid = BG_pad // tbg

    # ---- input prep: [B,Cin,H,W] -> [BG_pad*C, L]
    #      (pad H, flatten spatial, pad flat edges -> every conv tap becomes the
    #       constant lane offset x[row, p + kh*W + kw]; no im2col blow-up).
    xg = x.astype(compute_dtype).reshape(BG, C, H, W)
    xh = jnp.pad(xg, ((0, 0), (0, 0), (pad, pad), (0, 0)))
    xf = jnp.pad(xh.reshape(BG, C, Hp * W), ((0, 0), (0, 0), (pad, pad)))
    if BG_pad > BG:
        xf = jnp.pad(xf, ((0, BG_pad - BG), (0, 0), (0, 0)))
    x2d = xf.reshape(BG_pad * C, L)

    # ---- per-kw column-validity masks (zero row wrap-around taps), hoisted over
    #      kh.  Kept as a tiny streamed (k, Lm) input (a few KB) for robust
    #      lowering; the per-tap mask multiplies of the old kernel are gone.
    col = jnp.arange(Lm, dtype=jnp.int32) % W
    off = jnp.arange(k, dtype=jnp.int32)[:, None] - pad
    masks = (((col[None, :] + off) >= 0)
             & ((col[None, :] + off) < W)).astype(compute_dtype)       # (k, Lm)

    # ---- filter bank / bias: VMEM resident, n_basis on sublanes,
    #      K index ordered (kw, kh, c) to match the in-kernel tap assembly.
    w2d = jnp.transpose(weight, (0, 3, 2, 1)).reshape(N, k * k * C)
    w2d = w2d.astype(compute_dtype)
    b_col = (jnp.zeros((N, 1), jnp.float32) if bias is None
             else bias.reshape(N, 1).astype(jnp.float32))

    kernel = _make_stencil_kernel(tbg=tbg, C=C, N=N, k=k, W=W, pad=pad,
                                  chunks=chunks, use_mxu=use_mxu,
                                  out_dtype=out_dtype)

    in_block = tbg * C * L * in_itemsize
    out_block = tbg * N * S * out_itemsize
    w_bytes = w2d.size * in_itemsize
    vmem_limit = int(min(int(vmem * 0.9),
                         max(32 << 20,
                             3 * (in_block + out_block) + w_bytes + (4 << 20))))

    flops = 2 * BG_pad * N * S * C * k * k
    bytes_accessed = (BG_pad * C * L * in_itemsize
                      + grid * (masks.size * in_itemsize + w_bytes + N * 4)
                      + BG_pad * N * S * out_itemsize)

    out2d = pl.pallas_call(
        kernel,
        out_shape=jax.ShapeDtypeStruct((BG_pad * N, S), out_dtype),
        grid=(grid,),
        in_specs=[
            pl.BlockSpec((tbg * C, L), lambda i: (i, 0)),
            pl.BlockSpec((k, Lm), lambda i: (0, 0)),
            pl.BlockSpec((N, k * k * C), lambda i: (0, 0)),
            pl.BlockSpec((N, 1), lambda i: (0, 0)),
        ],
        out_specs=pl.BlockSpec((tbg * N, S), lambda i: (i, 0)),
        compiler_params=pltpu.CompilerParams(
            dimension_semantics=("parallel",),
            vmem_limit_bytes=vmem_limit),
        cost_estimate=pl.CostEstimate(flops=int(flops), transcendentals=0,
                                      bytes_accessed=int(bytes_accessed)),
    )(x2d, masks, w2d, b_col)

    # [BG_pad*N, S] -> [B, G*N, Ho, Wo]: pure metadata reshape (lane-dense store).
    return out2d[:BG * N].reshape(B, G * N, Ho, Wo)


# --------------------------------------------------------------------------- #
# Fallback path: im2col + matmul (stride != 1 or even kernel size).  Cold path.
# --------------------------------------------------------------------------- #
def _im2col_matmul_kernel(p_ref, w_ref, b_ref, o_ref):
    acc = jnp.dot(p_ref[...], w_ref[...], preferred_element_type=jnp.float32)
    o_ref[...] = (acc + b_ref[...]).astype(o_ref.dtype)


def _conv_basis_im2col(x, weight, bias, *, basis_size, stride):
    # TODO(synk): cold path kept simple; bandwidth/layout optimizations live in
    # the stride-1 fused-stencil path above.
    B, Cin, H, W = x.shape
    N, C, k, _ = weight.shape
    G = Cin // basis_size
    pad = k // 2
    Ho = (H + 2 * pad - k) // stride + 1
    Wo = (W + 2 * pad - k) // stride + 1

    xg = x.reshape(B, G, C, H, W)
    xp = jnp.pad(xg, ((0, 0), (0, 0), (0, 0), (pad, pad), (pad, pad)))
    cols = []
    for kh in range(k):
        for kw in range(k):
            cols.append(xp[:, :, :, kh:kh + (Ho - 1) * stride + 1:stride,
                                     kw:kw + (Wo - 1) * stride + 1:stride])
    patches = jnp.stack(cols, axis=3)                           # [B,G,C,k*k,Ho,Wo]
    patches = patches.transpose(0, 1, 4, 5, 2, 3).reshape(B * G * Ho * Wo, C * k * k)

    M, K = patches.shape
    tm = 256
    M_pad = _round_up(M, tm)
    if M_pad > M:
        patches = jnp.pad(patches, ((0, M_pad - M), (0, 0)))

    # Lane-dense output: pad n_basis up to a full 128-lane tile (avoids masked
    # partial stores on a 4-wide lane dim).
    N_pad = _round_up(N, 128)
    w_mat = jnp.zeros((K, N_pad), patches.dtype).at[:, :N].set(
        weight.reshape(N, K).T.astype(patches.dtype))
    b_mat = jnp.zeros((1, N_pad), jnp.float32)
    if bias is not None:
        b_mat = b_mat.at[:, :N].set(bias.reshape(1, N).astype(jnp.float32))

    out_flat = pl.pallas_call(
        _im2col_matmul_kernel,
        out_shape=jax.ShapeDtypeStruct((M_pad, N_pad), jnp.float32),
        grid=(M_pad // tm,),
        in_specs=[pl.BlockSpec((tm, K), lambda i: (i, 0)),
                  pl.BlockSpec((K, N_pad), lambda i: (0, 0)),
                  pl.BlockSpec((1, N_pad), lambda i: (0, 0))],
        out_specs=pl.BlockSpec((tm, N_pad), lambda i: (i, 0)),
        compiler_params=pltpu.CompilerParams(dimension_semantics=("parallel",)),
    )(patches, w_mat, b_mat)

    out = out_flat[:M, :N].reshape(B, G, Ho, Wo, N).transpose(0, 1, 4, 2, 3)
    return out.reshape(B, G * N, Ho, Wo).astype(x.dtype)


# --------------------------------------------------------------------------- #
# Public forward
# --------------------------------------------------------------------------- #
def conv_basis_forward(x, weight, bias, *, basis_size, stride=1,
                       compute_dtype=jnp.float32):
    """Pallas forward of conv_basis.

    x       : [B, in_channels, H, W]
    weight  : [n_basis, basis_size, k, k]   (the shared FLANC filter bank)
    bias    : [n_basis] or None
    returns : [B, (in_channels // basis_size) * n_basis, Ho, Wo]  (x.dtype)

    compute_dtype controls the activation/weight stream inside the kernel.
    Default float32 matches the PyTorch module bit-closely; pass jnp.bfloat16 to
    halve HBM/VMEM traffic (accumulation stays float32).
    """
    assert x.shape[1] % basis_size == 0 and weight.shape[1] == basis_size
    k = weight.shape[-1]
    if stride == 1 and k % 2 == 1:
        return _conv_basis_stride1(x, weight, bias, basis_size=basis_size,
                                   compute_dtype=compute_dtype)
    return _conv_basis_im2col(x, weight, bias, basis_size=basis_size, stride=stride)


# --------------------------------------------------------------------------- #
# Pure-JAX reference (mirrors the PyTorch per-group F.conv2d + cat)
# --------------------------------------------------------------------------- #
def conv_basis_reference(x, weight, bias, *, basis_size, stride=1):
    k = weight.shape[-1]
    pad = k // 2
    G = x.shape[1] // basis_size
    outs = []
    for g in range(G):
        xi = x[:, g * basis_size:(g + 1) * basis_size]
        o = jax.lax.conv_general_dilated(
            xi, weight, (stride, stride), [(pad, pad), (pad, pad)],
            dimension_numbers=("NCHW", "OIHW", "NCHW"),
            precision=jax.lax.Precision.HIGHEST)
        if bias is not None:
            o = o + bias[None, :, None, None]
        outs.append(o)
    return jnp.concatenate(outs, axis=1)


if __name__ == "__main__":
    key = jax.random.PRNGKey(0)
    k1, k2, k3, k4, k5, k6 = jax.random.split(key, 6)

    # --- Test 1: module-sized shapes -> VPU stencil path, exact f32 stream ----
    B, in_channels, H, W = 2, 4, 16, 16
    basis_size, n_basis, ksz = 2, 4, 3
    x = jax.random.normal(k1, (B, in_channels, H, W), dtype=jnp.float32)
    fb = jax.random.normal(k2, (n_basis, basis_size, ksz, ksz), dtype=jnp.float32) * 0.1
    b = jax.random.normal(k3, (n_basis,), dtype=jnp.float32) * 0.1

    out = conv_basis_forward(x, fb, b, basis_size=basis_size, stride=1)
    out = jax.block_until_ready(out)
    ref = conv_basis_reference(x, fb, b, basis_size=basis_size, stride=1)
    assert out.shape == (B, (in_channels // basis_size) * n_basis, H, W), out.shape
    err = float(jnp.max(jnp.abs(out - ref)))
    assert err < 1e-3, f"VPU path max abs err {err}"

    # --- Test 2: realistic bank size -> MXU path, bf16 activation stream ------
    B2, Cin2, bs2, nb2 = 2, 64, 32, 32
    x2 = jax.random.normal(k4, (B2, Cin2, H, W), dtype=jnp.float32)
    fb2 = jax.random.normal(k5, (nb2, bs2, ksz, ksz), dtype=jnp.float32) * 0.05
    b2 = jax.random.normal(k6, (nb2,), dtype=jnp.float32) * 0.1

    out2 = conv_basis_forward(x2, fb2, b2, basis_size=bs2, stride=1,
                              compute_dtype=jnp.bfloat16)
    out2 = jax.block_until_ready(out2)
    # reference on the same bf16-quantized activations/weights the kernel streams
    x2q = x2.astype(jnp.bfloat16).astype(jnp.float32)
    fb2q = fb2.astype(jnp.bfloat16).astype(jnp.float32)
    ref2 = conv_basis_reference(x2q, fb2q, b2, basis_size=bs2, stride=1)
    assert out2.shape == (B2, (Cin2 // bs2) * nb2, H, W), out2.shape
    err2 = float(jnp.max(jnp.abs(out2 - ref2)))
    assert err2 < 2e-2, f"MXU path max abs err {err2}"

    # --- Test 3: stride-2 fallback (im2col + matmul cold path) ----------------
    out3 = conv_basis_forward(x, fb, b, basis_size=basis_size, stride=2)
    out3 = jax.block_until_ready(out3)
    ref3 = conv_basis_reference(x, fb, b, basis_size=basis_size, stride=2)
    assert out3.shape == ref3.shape, (out3.shape, ref3.shape)
    err3 = float(jnp.max(jnp.abs(out3 - ref3)))
    assert err3 < 1e-3, f"fallback max abs err {err3}"

    print("KERNEL_OK")
</pallas_src>

<mosaic_0001>
module attributes {stable_mosaic.version = 11 : i64} {
  func.func @kernel(%arg0: i32, %arg1: memref<8x290xf32, #tpu.memory_space<vmem>>, %arg2: memref<3x288xf32, #tpu.memory_space<vmem>>, %arg3: memref<4x18xf32, #tpu.memory_space<vmem>>, %arg4: memref<4x1xf32, #tpu.memory_space<vmem>>, %arg5: memref<16x256xf32, #tpu.memory_space<vmem>>) attributes {dimension_semantics = [#tpu.dimension_semantics<parallel>], iteration_bounds = array<i64: 1>, scalar_prefetch = 0 : i64, scratch_operands = 0 : i64, tpu.core_type = #tpu.core_type<tc>, window_params = [{transform_indices = @transform_0, window_bounds = array<i64: 8, 290>}, {pipeline_mode = #tpu.pipeline_mode<synchronous>, transform_indices = @transform_1, window_bounds = array<i64: 3, 288>}, {pipeline_mode = #tpu.pipeline_mode<synchronous>, transform_indices = @transform_2, window_bounds = array<i64: 4, 18>}, {pipeline_mode = #tpu.pipeline_mode<synchronous>, transform_indices = @transform_3, window_bounds = array<i64: 4, 1>}, {transform_indices = @transform_4, window_bounds = array<i64: 16, 256>}]} {
    %c0 = arith.constant 0 : index
    %c0_0 = arith.constant 0 : index
    %0 = vector.load %arg4[%c0, %c0_0] : memref<4x1xf32, #tpu.memory_space<vmem>>, vector<4x1xf32>
    %c0_1 = arith.constant 0 : index
    %c0_2 = arith.constant 0 : index
    %1 = vector.load %arg3[%c0_1, %c0_2] : memref<4x18xf32, #tpu.memory_space<vmem>>, vector<4x18xf32>
    %cst = arith.constant 0.000000e+00 : f32
    %2 = vector.broadcast %cst : f32 to vector<4x256xf32>
    %c0_3 = arith.constant 0 : index
    %c0_4 = arith.constant 0 : index
    %3 = vector.load %arg1[%c0_3, %c0_4] : memref<8x290xf32, #tpu.memory_space<vmem>>, vector<2x288xf32>
    %c0_5 = arith.constant 0 : index
    %c0_6 = arith.constant 0 : index
    %4 = vector.load %arg2[%c0_5, %c0_6] : memref<3x288xf32, #tpu.memory_space<vmem>>, vector<1x288xf32>
    %5 = vector.broadcast %4 : vector<1x288xf32> to vector<2x288xf32>
    %6 = arith.mulf %3, %5 : vector<2x288xf32>
    %7 = vector.extract_strided_slice %6 {offsets = [0, 0], sizes = [2, 256], strides = [1, 1]} : vector<2x288xf32> to vector<2x256xf32>
    %8 = vector.extract_strided_slice %1 {offsets = [0, 0], sizes = [4, 1], strides = [1, 1]} : vector<4x18xf32> to vector<4x1xf32>
    %9 = vector.extract_strided_slice %7 {offsets = [0, 0], sizes = [1, 256], strides = [1, 1]} : vector<2x256xf32> to vector<1x256xf32>
    %10 = vector.broadcast %8 : vector<4x1xf32> to vector<4x256xf32>
    %11 = vector.broadcast %9 : vector<1x256xf32> to vector<4x256xf32>
    %12 = arith.mulf %10, %11 : vector<4x256xf32>
    %13 = arith.addf %2, %12 : vector<4x256xf32>
    %14 = vector.extract_strided_slice %1 {offsets = [0, 1], sizes = [4, 1], strides = [1, 1]} : vector<4x18xf32> to vector<4x1xf32>
    %15 = vector.extract_strided_slice %7 {offsets = [1, 0], sizes = [1, 256], strides = [1, 1]} : vector<2x256xf32> to vector<1x256xf32>
    %16 = vector.broadcast %14 : vector<4x1xf32> to vector<4x256xf32>
    %17 = vector.broadcast %15 : vector<1x256xf32> to vector<4x256xf32>
    %18 = arith.mulf %16, %17 : vector<4x256xf32>
    %19 = arith.addf %13, %18 : vector<4x256xf32>
    %20 = vector.extract_strided_slice %6 {offsets = [0, 16], sizes = [2, 256], strides = [1, 1]} : vector<2x288xf32> to vector<2x256xf32>
    %21 = vector.extract_strided_slice %1 {offsets = [0, 2], sizes = [4, 1], strides = [1, 1]} : vector<4x18xf32> to vector<4x1xf32>
    %22 = vector.extract_strided_slice %20 {offsets = [0, 0], sizes = [1, 256], strides = [1, 1]} : vector<2x256xf32> to vector<1x256xf32>
    %23 = vector.broadcast %21 : vector<4x1xf32> to vector<4x256xf32>
    %24 = vector.broadcast %22 : vector<1x256xf32> to vector<4x256xf32>
    %25 = arith.mulf %23, %24 : vector<4x256xf32>
    %26 = arith.addf %19, %25 : vector<4x256xf32>
    %27 = vector.extract_strided_slice %1 {offsets = [0, 3], sizes = [4, 1], strides = [1, 1]} : vector<4x18xf32> to vector<4x1xf32>
    %28 = vector.extract_strided_slice %20 {offsets = [1, 0], sizes = [1, 256], strides = [1, 1]} : vector<2x256xf32> to vector<1x256xf32>
    %29 = vector.broadcast %27 : vector<4x1xf32> to vector<4x256xf32>
    %30 = vector.broadcast %28 : vector<1x256xf32> to vector<4x256xf32>
    %31 = arith.mulf %29, %30 : vector<4x256xf32>
    %32 = arith.addf %26, %31 : vector<4x256xf32>
    %33 = vector.extract_strided_slice %6 {offsets = [0, 32], sizes = [2, 256], strides = [1, 1]} : vector<2x288xf32> to vector<2x256xf32>
    %34 = vector.extract_strided_slice %1 {offsets = [0, 4], sizes = [4, 1], strides = [1, 1]} : vector<4x18xf32> to vector<4x1xf32>
    %35 = vector.extract_strided_slice %33 {offsets = [0, 0], sizes = [1, 256], strides = [1, 1]} : vector<2x256xf32> to vector<1x256xf32>
    %36 = vector.broadcast %34 : vector<4x1xf32> to vector<4x256xf32>
    %37 = vector.broadcast %35 : vector<1x256xf32> to vector<4x256xf32>
    %38 = arith.mulf %36, %37 : vector<4x256xf32>
    %39 = arith.addf %32, %38 : vector<4x256xf32>
    %40 = vector.extract_strided_slice %1 {offsets = [0, 5], sizes = [4, 1], strides = [1, 1]} : vector<4x18xf32> to vector<4x1xf32>
    %41 = vector.extract_strided_slice %33 {offsets = [1, 0], sizes = [1, 256], strides = [1, 1]} : vector<2x256xf32> to vector<1x256xf32>
    %42 = vector.broadcast %40 : vector<4x1xf32> to vector<4x256xf32>
    %43 = vector.broadcast %41 : vector<1x256xf32> to vector<4x256xf32>
    %44 = arith.mulf %42, %43 : vector<4x256xf32>
    %45 = arith.addf %39, %44 : vector<4x256xf32>
    %c0_7 = arith.constant 0 : index
    %c1 = arith.constant 1 : index
    %46 = vector.load %arg1[%c0_7, %c1] : memref<8x290xf32, #tpu.memory_space<vmem>>, vector<2x288xf32>
    %47 = vector.extract_strided_slice %46 {offsets = [0, 0], sizes = [2, 256], strides = [1, 1]} : vector<2x288xf32> to vector<2x256xf32>
    %48 = vector.extract_strided_slice %1 {offsets = [0, 6], sizes = [4, 1], strides = [1, 1]} : vector<4x18xf32> to vector<4x1xf32>
    %49 = vector.extract_strided_slice %47 {offsets = [0, 0], sizes = [1, 256], strides = [1, 1]} : vector<2x256xf32> to vector<1x256xf32>
    %50 = vector.broadcast %48 : vector<4x1xf32> to vector<4x256xf32>
    %51 = vector.broadcast %49 : vector<1x256xf32> to vector<4x256xf32>
    %52 = arith.mulf %50, %51 : vector<4x256xf32>
    %53 = arith.addf %45, %52 : vector<4x256xf32>
    %54 = vector.extract_strided_slice %1 {offsets = [0, 7], sizes = [4, 1], strides = [1, 1]} : vector<4x18xf32> to vector<4x1xf32>
    %55 = vector.extract_strided_slice %47 {offsets = [1, 0], sizes = [1, 256], strides = [1, 1]} : vector<2x256xf32> to vector<1x256xf32>
    %56 = vector.broadcast %54 : vector<4x1xf32> to vector<4x256xf32>
    %57 = vector.broadcast %55 : vector<1x256xf32> to vector<4x256xf32>
    %58 = arith.mulf %56, %57 : vector<4x256xf32>
    %59 = arith.addf %53, %58 : vector<4x256xf32>
    %60 = vector.extract_strided_slice %46 {offsets = [0, 16], sizes = [2, 256], strides = [1, 1]} : vector<2x288xf32> to vector<2x256xf32>
    %61 = vector.extract_strided_slice %1 {offsets = [0, 8], sizes = [4, 1], strides = [1, 1]} : vector<4x18xf32> to vector<4x1xf32>
    %62 = vector.extract_strided_slice %60 {offsets = [0, 0], sizes = [1, 256], strides = [1, 1]} : vector<2x256xf32> to vector<1x256xf32>
    %63 = vector.broadcast %61 : vector<4x1xf32> to vector<4x256xf32>
    %64 = vector.broadcast %62 : vector<1x256xf32> to vector<4x256xf32>
    %65 = arith.mulf %63, %64 : vector<4x256xf32>
    %66 = arith.addf %59, %65 : vector<4x256xf32>
    %67 = vector.extract_strided_slice %1 {offsets = [0, 9], sizes = [4, 1], strides = [1, 1]} : vector<4x18xf32> to vector<4x1xf32>
    %68 = vector.extract_strided_slice %60 {offsets = [1, 0], sizes = [1, 256], strides = [1, 1]} : vector<2x256xf32> to vector<1x256xf32>
    %69 = vector.broadcast %67 : vector<4x1xf32> to vector<4x256xf32>
    %70 = vector.broadcast %68 : vector<1x256xf32> to vector<4x256xf32>
    %71 = arith.mulf %69, %70 : vector<4x256xf32>
    %72 = arith.addf %66, %71 : vector<4x256xf32>
    %73 = vector.extract_strided_slice %46 {offsets = [0, 32], sizes = [2, 256], strides = [1, 1]} : vector<2x288xf32> to vector<2x256xf32>
    %74 = vector.extract_strided_slice %1 {offsets = [0, 10], sizes = [4, 1], strides = [1, 1]} : vector<4x18xf32> to vector<4x1xf32>
    %75 = vector.extract_strided_slice %73 {offsets = [0, 0], sizes = [1, 256], strides = [1, 1]} : vector<2x256xf32> to vector<1x256xf32>
    %76 = vector.broadcast %74 : vector<4x1xf32> to vector<4x256xf32>
    %77 = vector.broadcast %75 : vector<1x256xf32> to vector<4x256xf32>
    %78 = arith.mulf %76, %77 : vector<4x256xf32>
    %79 = arith.addf %72, %78 : vector<4x256xf32>
    %80 = vector.extract_strided_slice %1 {offsets = [0, 11], sizes = [4, 1], strides = [1, 1]} : vector<4x18xf32> to vector<4x1xf32>
    %81 = vector.extract_strided_slice %73 {offsets = [1, 0], sizes = [1, 256], strides = [1, 1]} : vector<2x256xf32> to vector<1x256xf32>
    %82 = vector.broadcast %80 : vector<4x1xf32> to vector<4x256xf32>
    %83 = vector.broadcast %81 : vector<1x256xf32> to vector<4x256xf32>
    %84 = arith.mulf %82, %83 : vector<4x256xf32>
    %85 = arith.addf %79, %84 : vector<4x256xf32>
    %c0_8 = arith.constant 0 : index
    %c2 = arith.constant 2 : index
    %86 = vector.load %arg1[%c0_8, %c2] : memref<8x290xf32, #tpu.memory_space<vmem>>, vector<2x288xf32>
    %c2_9 = arith.constant 2 : index
    %c0_10 = arith.constant 0 : index
    %87 = vector.load %arg2[%c2_9, %c0_10] : memref<3x288xf32, #tpu.memory_space<vmem>>, vector<1x288xf32>
    %88 = vector.broadcast %87 : vector<1x288xf32> to vector<2x288xf32>
    %89 = arith.mulf %86, %88 : vector<2x288xf32>
    %90 = vector.extract_strided_slice %89 {offsets = [0, 0], sizes = [2, 256], strides = [1, 1]} : vector<2x288xf32> to vector<2x256xf32>
    %91 = vector.extract_strided_slice %1 {offsets = [0, 12], sizes = [4, 1], strides = [1, 1]} : vector<4x18xf32> to vector<4x1xf32>
    %92 = vector.extract_strided_slice %90 {offsets = [0, 0], sizes = [1, 256], strides = [1, 1]} : vector<2x256xf32> to vector<1x256xf32>
    %93 = vector.broadcast %91 : vector<4x1xf32> to vector<4x256xf32>
    %94 = vector.broadcast %92 : vector<1x256xf32> to vector<4x256xf32>
    %95 = arith.mulf %93, %94 : vector<4x256xf32>
    %96 = arith.addf %85, %95 : vector<4x256xf32>
    %97 = vector.extract_strided_slice %1 {offsets = [0, 13], sizes = [4, 1], strides = [1, 1]} : vector<4x18xf32> to vector<4x1xf32>
    %98 = vector.extract_strided_slice %90 {offsets = [1, 0], sizes = [1, 256], strides = [1, 1]} : vector<2x256xf32> to vector<1x256xf32>
    %99 = vector.broadcast %97 : vector<4x1xf32> to vector<4x256xf32>
    %100 = vector.broadcast %98 : vector<1x256xf32> to vector<4x256xf32>
    %101 = arith.mulf %99, %100 : vector<4x256xf32>
    %102 = arith.addf %96, %101 : vector<4x256xf32>
    %103 = vector.extract_strided_slice %89 {offsets = [0, 16], sizes = [2, 256], strides = [1, 1]} : vector<2x288xf32> to vector<2x256xf32>
    %104 = vector.extract_strided_slice %1 {offsets = [0, 14], sizes = [4, 1], strides = [1, 1]} : vector<4x18xf32> to vector<4x1xf32>
    %105 = vector.extract_strided_slice %103 {offsets = [0, 0], sizes = [1, 256], strides = [1, 1]} : vector<2x256xf32> to vector<1x256xf32>
    %106 = vector.broadcast %104 : vector<4x1xf32> to vector<4x256xf32>
    %107 = vector.broadcast %105 : vector<1x256xf32> to vector<4x256xf32>
    %108 = arith.mulf %106, %107 : vector<4x256xf32>
    %109 = arith.addf %102, %108 : vector<4x256xf32>
    %110 = vector.extract_strided_slice %1 {offsets = [0, 15], sizes = [4, 1], strides = [1, 1]} : vector<4x18xf32> to vector<4x1xf32>
    %111 = vector.extract_strided_slice %103 {offsets = [1, 0], sizes = [1, 256], strides = [1, 1]} : vector<2x256xf32> to vector<1x256xf32>
    %112 = vector.broadcast %110 : vector<4x1xf32> to vector<4x256xf32>
    %113 = vector.broadcast %111 : vector<1x256xf32> to vector<4x256xf32>
    %114 = arith.mulf %112, %113 : vector<4x256xf32>
    %115 = arith.addf %109, %114 : vector<4x256xf32>
    %116 = vector.extract_strided_slice %89 {offsets = [0, 32], sizes = [2, 256], strides = [1, 1]} : vector<2x288xf32> to vector<2x256xf32>
    %117 = vector.extract_strided_slice %1 {offsets = [0, 16], sizes = [4, 1], strides = [1, 1]} : vector<4x18xf32> to vector<4x1xf32>
    %118 = vector.extract_strided_slice %116 {offsets = [0, 0], sizes = [1, 256], strides = [1, 1]} : vector<2x256xf32> to vector<1x256xf32>
    %119 = vector.broadcast %117 : vector<4x1xf32> to vector<4x256xf32>
    %120 = vector.broadcast %118 : vector<1x256xf32> to vector<4x256xf32>
    %121 = arith.mulf %119, %120 : vector<4x256xf32>
    %122 = arith.addf %115, %121 : vector<4x256xf32>
    %123 = vector.extract_strided_slice %1 {offsets = [0, 17], sizes = [4, 1], strides = [1, 1]} : vector<4x18xf32> to vector<4x1xf32>
    %124 = vector.extract_strided_slice %116 {offsets = [1, 0], sizes = [1, 256], strides = [1, 1]} : vector<2x256xf32> to vector<1x256xf32>
    %125 = vector.broadcast %123 : vector<4x1xf32> to vector<4x256xf32>
    %126 = vector.broadcast %124 : vector<1x256xf32> to vector<4x256xf32>
    %127 = arith.mulf %125, %126 : vector<4x256xf32>
    %128 = arith.addf %122, %127 : vector<4x256xf32>
    %129 = vector.broadcast %0 : vector<4x1xf32> to vector<4x256xf32>
    %130 = arith.addf %128, %129 : vector<4x256xf32>
    %c0_11 = arith.constant 0 : index
    %c0_12 = arith.constant 0 : index
    %131 = vector.load %arg5[%c0_11, %c0_12] : memref<16x256xf32, #tpu.memory_space<vmem>>, vector<4x256xf32>
    tpu.vector_store %arg5[%c0_11, %c0_12], %130 {strides = array<i32>} : memref<16x256xf32, #tpu.memory_space<vmem>>, vector<4x256xf32>,
    %cst_13 = arith.constant 0.000000e+00 : f32
    %132 = vector.broadcast %cst_13 : f32 to vector<4x256xf32>
    %c2_14 = arith.constant 2 : index
    %c0_15 = arith.constant 0 : index
    %133 = vector.load %arg1[%c2_14, %c0_15] : memref<8x290xf32, #tpu.memory_space<vmem>>, vector<2x288xf32>
    %c0_16 = arith.constant 0 : index
    %c0_17 = arith.constant 0 : index
    %134 = vector.load %arg2[%c0_16, %c0_17] : memref<3x288xf32, #tpu.memory_space<vmem>>, vector<1x288xf32>
    %135 = vector.broadcast %134 : vector<1x288xf32> to vector<2x288xf32>
    %136 = arith.mulf %133, %135 : vector<2x288xf32>
    %137 = vector.extract_strided_slice %136 {offsets = [0, 0], sizes = [2, 256], strides = [1, 1]} : vector<2x288xf32> to vector<2x256xf32>
    %138 = vector.extract_strided_slice %1 {offsets = [0, 0], sizes = [4, 1], strides = [1, 1]} : vector<4x18xf32> to vector<4x1xf32>
    %139 = vector.extract_strided_slice %137 {offsets = [0, 0], sizes = [1, 256], strides = [1, 1]} : vector<2x256xf32> to vector<1x256xf32>
    %140 = vector.broadcast %138 : vector<4x1xf32> to vector<4x256xf32>
    %141 = vector.broadcast %139 : vector<1x256xf32> to vector<4x256xf32>
    %142 = arith.mulf %140, %141 : vector<4x256xf32>
    %143 = arith.addf %132, %142 : vector<4x256xf32>
    %144 = vector.extract_strided_slice %1 {offsets = [0, 1], sizes = [4, 1], strides = [1, 1]} : vector<4x18xf32> to vector<4x1xf32>
    %145 = vector.extract_strided_slice %137 {offsets = [1, 0], sizes = [1, 256], strides = [1, 1]} : vector<2x256xf32> to vector<1x256xf32>
    %146 = vector.broadcast %144 : vector<4x1xf32> to vector<4x256xf32>
    %147 = vector.broadcast %145 : vector<1x256xf32> to vector<4x256xf32>
    %148 = arith.mulf %146, %147 : vector<4x256xf32>
    %149 = arith.addf %143, %148 : vector<4x256xf32>
    %150 = vector.extract_strided_slice %136 {offsets = [0, 16], sizes = [2, 256], strides = [1, 1]} : vector<2x288xf32> to vector<2x256xf32>
    %151 = vector.extract_strided_slice %1 {offsets = [0, 2], sizes = [4, 1], strides = [1, 1]} : vector<4x18xf32> to vector<4x1xf32>
    %152 = vector.extract_strided_slice %150 {offsets = [0, 0], sizes = [1, 256], strides = [1, 1]} : vector<2x256xf32> to vector<1x256xf32>
    %153 = vector.broadcast %151 : vector<4x1xf32> to vector<4x256xf32>
    %154 = vector.broadcast %152 : vector<1x256xf32> to vector<4x256xf32>
    %155 = arith.mulf %153, %154 : vector<4x256xf32>
    %156 = arith.addf %149, %155 : vector<4x256xf32>
    %157 = vector.extract_strided_slice %1 {offsets = [0, 3], sizes = [4, 1], strides = [1, 1]} : vector<4x18xf32> to vector<4x1xf32>
    %158 = vector.extract_strided_slice %150 {offsets = [1, 0], sizes = [1, 256], strides = [1, 1]} : vector<2x256xf32> to vector<1x256xf32>
    %159 = vector.broadcast %157 : vector<4x1xf32> to vector<4x256xf32>
    %160 = vector.broadcast %158 : vector<1x256xf32> to vector<4x256xf32>
    %161 = arith.mulf %159, %160 : vector<4x256xf32>
    %162 = arith.addf %156, %161 : vector<4x256xf32>
    %163 = vector.extract_strided_slice %136 {offsets = [0, 32], sizes = [2, 256], strides = [1, 1]} : vector<2x288xf32> to vector<2x256xf32>
    %164 = vector.extract_strided_slice %1 {offsets = [0, 4], sizes = [4, 1], strides = [1, 1]} : vector<4x18xf32> to vector<4x1xf32>
    %165 = vector.extract_strided_slice %163 {offsets = [0, 0], sizes = [1, 256], strides = [1, 1]} : vector<2x256xf32> to vector<1x256xf32>
    %166 = vector.broadcast %164 : vector<4x1xf32> to vector<4x256xf32>
    %167 = vector.broadcast %165 : vector<1x256xf32> to vector<4x256xf32>
    %168 = arith.mulf %166, %167 : vector<4x256xf32>
    %169 = arith.addf %162, %168 : vector<4x256xf32>
    %170 = vector.extract_strided_slice %1 {offsets = [0, 5], sizes = [4, 1], strides = [1, 1]} : vector<4x18xf32> to vector<4x1xf32>
    %171 = vector.extract_strided_slice %163 {offsets = [1, 0], sizes = [1, 256], strides = [1, 1]} : vector<2x256xf32> to vector<1x256xf32>
    %172 = vector.broadcast %170 : vector<4x1xf32> to vector<4x256xf32>
    %173 = vector.broadcast %171 : vector<1x256xf32> to vector<4x256xf32>
    %174 = arith.mulf %172, %173 : vector<4x256xf32>
    %175 = arith.addf %169, %174 : vector<4x256xf32>
    %c2_18 = arith.constant 2 : index
    %c1_19 = arith.constant 1 : index
    %176 = vector.load %arg1[%c2_18, %c1_19] : memref<8x290xf32, #tpu.memory_space<vmem>>, vector<2x288xf32>
    %177 = vector.extract_strided_slice %176 {offsets = [0, 0], sizes = [2, 256], strides = [1, 1]} : vector<2x288xf32> to vector<2x256xf32>
    %178 = vector.extract_strided_slice %1 {offsets = [0, 6], sizes = [4, 1], strides = [1, 1]} : vector<4x18xf32> to vector<4x1xf32>
    %179 = vector.extract_strided_slice %177 {offsets = [0, 0], sizes = [1, 256], strides = [1, 1]} : vector<2x256xf32> to vector<1x256xf32>
    %180 = vector.broadcast %178 : vector<4x1xf32> to vector<4x256xf32>
    %181 = vector.broadcast %179 : vector<1x256xf32> to vector<4x256xf32>
    %182 = arith.mulf %180, %181 : vector<4x256xf32>
    %183 = arith.addf %175, %182 : vector<4x256xf32>
    %184 = vector.extract_strided_slice %1 {offsets = [0, 7], sizes = [4, 1], strides = [1, 1]} : vector<4x18xf32> to vector<4x1xf32>
    %185 = vector.extract_strided_slice %177 {offsets = [1, 0], sizes = [1, 256], strides = [1, 1]} : vector<2x256xf32> to vector<1x256xf32>
    %186 = vector.broadcast %184 : vector<4x1xf32> to vector<4x256xf32>
    %187 = vector.broadcast %185 : vector<1x256xf32> to vector<4x256xf32>
    %188 = arith.mulf %186, %187 : vector<4x256xf32>
    %189 = arith.addf %183, %188 : vector<4x256xf32>
    %190 = vector.extract_strided_slice %176 {offsets = [0, 16], sizes = [2, 256], strides = [1, 1]} : vector<2x288xf32> to vector<2x256xf32>
    %191 = vector.extract_strided_slice %1 {offsets = [0, 8], sizes = [4, 1], strides = [1, 1]} : vector<4x18xf32> to vector<4x1xf32>
    %192 = vector.extract_strided_slice %190 {offsets = [0, 0], sizes = [1, 256], strides = [1, 1]} : vector<2x256xf32> to vector<1x256xf32>
    %193 = vector.broadcast %191 : vector<4x1xf32> to vector<4x256xf32>
    %194 = vector.broadcast %192 : vector<1x256xf32> to vector<4x256xf32>
    %195 = arith.mulf %193, %194 : vector<4x256xf32>
    %196 = arith.addf %189, %195 : vector<4x256xf32>
    %197 = vector.extract_strided_slice %1 {offsets = [0, 9], sizes = [4, 1], strides = [1, 1]} : vector<4x18xf32> to vector<4x1xf32>
    %198 = vector.extract_strided_slice %190 {offsets = [1, 0], sizes = [1, 256], strides = [1, 1]} : vector<2x256xf32> to vector<1x256xf32>
    %199 = vector.broadcast %197 : vector<4x1xf32> to vector<4x256xf32>
    %200 = vector.broadcast %198 : vector<1x256xf32> to vector<4x256xf32>
    %201 = arith.mulf %199, %200 : vector<4x256xf32>
    %202 = arith.addf %196, %201 : vector<4x256xf32>
    %203 = vector.extract_strided_slice %176 {offsets = [0, 32], sizes = [2, 256], strides = [1, 1]} : vector<2x288xf32> to vector<2x256xf32>
    %204 = vector.extract_strided_slice %1 {offsets = [0, 10], sizes = [4, 1], strides = [1, 1]} : vector<4x18xf32> to vector<4x1xf32>
    %205 = vector.extract_strided_slice %203 {offsets = [0, 0], sizes = [1, 256], strides = [1, 1]} : vector<2x256xf32> to vector<1x256xf32>
    %206 = vector.broadcast %204 : vector<4x1xf32> to vector<4x256xf32>
    %207 = vector.broadcast %205 : vector<1x256xf32> to vector<4x256xf32>
    %208 = arith.mulf %206, %207 : vector<4x256xf32>
    %209 = arith.addf %202, %208 : vector<4x256xf32>
    %210 = vector.extract_strided_slice %1 {offsets = [0, 11], sizes = [4, 1], strides = [1, 1]} : vector<4x18xf32> to vector<4x1xf32>
    %211 = vector.extract_strided_slice %203 {offsets = [1, 0], sizes = [1, 256], strides = [1, 1]} : vector<2x256xf32> to vector<1x256xf32>
    %212 = vector.broadcast %210 : vector<4x1xf32> to vector<4x256xf32>
    %213 = vector.broadcast %211 : vector<1x256xf32> to vector<4x256xf32>
    %214 = arith.mulf %212, %213 : vector<4x256xf32>
    %215 = arith.addf %209, %214 : vector<4x256xf32>
    %c2_20 = arith.constant 2 : index
    %c2_21 = arith.constant 2 : index
    %216 = vector.load %arg1[%c2_20, %c2_21] : memref<8x290xf32, #tpu.memory_space<vmem>>, vector<2x288xf32>
    %c2_22 = arith.constant 2 : index
    %c0_23 = arith.constant 0 : index
    %217 = vector.load %arg2[%c2_22, %c0_23] : memref<3x288xf32, #tpu.memory_space<vmem>>, vector<1x288xf32>
    %218 = vector.broadcast %217 : vector<1x288xf32> to vector<2x288xf32>
    %219 = arith.mulf %216, %218 : vector<2x288xf32>
    %220 = vector.extract_strided_slice %219 {offsets = [0, 0], sizes = [2, 256], strides = [1, 1]} : vector<2x288xf32> to vector<2x256xf32>
    %221 = vector.extract_strided_slice %1 {offsets = [0, 12], sizes = [4, 1], strides = [1, 1]} : vector<4x18xf32> to vector<4x1xf32>
    %222 = vector.extract_strided_slice %220 {offsets = [0, 0], sizes = [1, 256], strides = [1, 1]} : vector<2x256xf32> to vector<1x256xf32>
    %223 = vector.broadcast %221 : vector<4x1xf32> to vector<4x256xf32>
    %224 = vector.broadcast %222 : vector<1x256xf32> to vector<4x256xf32>
    %225 = arith.mulf %223, %224 : vector<4x256xf32>
    %226 = arith.addf %215, %225 : vector<4x256xf32>
    %227 = vector.extract_strided_slice %1 {offsets = [0, 13], sizes = [4, 1], strides = [1, 1]} : vector<4x18xf32> to vector<4x1xf32>
    %228 = vector.extract_strided_slice %220 {offsets = [1, 0], sizes = [1, 256], strides = [1, 1]} : vector<2x256xf32> to vector<1x256xf32>
    %229 = vector.broadcast %227 : vector<4x1xf32> to vector<4x256xf32>
    %230 = vector.broadcast %228 : vector<1x256xf32> to vector<4x256xf32>
    %231 = arith.mulf %229, %230 : vector<4x256xf32>
    %232 = arith.addf %226, %231 : vector<4x256xf32>
    %233 = vector.extract_strided_slice %219 {offsets = [0, 16], sizes = [2, 256], strides = [1, 1]} : vector<2x288xf32> to vector<2x256xf32>
    %234 = vector.extract_strided_slice %1 {offsets = [0, 14], sizes = [4, 1], strides = [1, 1]} : vector<4x18xf32> to vector<4x1xf32>
    %235 = vector.extract_strided_slice %233 {offsets = [0, 0], sizes = [1, 256], strides = [1, 1]} : vector<2x256xf32> to vector<1x256xf32>
    %236 = vector.broadcast %234 : vector<4x1xf32> to vector<4x256xf32>
    %237 = vector.broadcast %235 : vector<1x256xf32> to vector<4x256xf32>
    %238 = arith.mulf %236, %237 : vector<4x256xf32>
    %239 = arith.addf %232, %238 : vector<4x256xf32>
    %240 = vector.extract_strided_slice %1 {offsets = [0, 15], sizes = [4, 1], strides = [1, 1]} : vector<4x18xf32> to vector<4x1xf32>
    %241 = vector.extract_strided_slice %233 {offsets = [1, 0], sizes = [1, 256], strides = [1, 1]} : vector<2x256xf32> to vector<1x256xf32>
    %242 = vector.broadcast %240 : vector<4x1xf32> to vector<4x256xf32>
    %243 = vector.broadcast %241 : vector<1x256xf32> to vector<4x256xf32>
    %244 = arith.mulf %242, %243 : vector<4x256xf32>
    %245 = arith.addf %239, %244 : vector<4x256xf32>
    %246 = vector.extract_strided_slice %219 {offsets = [0, 32], sizes = [2, 256], strides = [1, 1]} : vector<2x288xf32> to vector<2x256xf32>
    %247 = vector.extract_strided_slice %1 {offsets = [0, 16], sizes = [4, 1], strides = [1, 1]} : vector<4x18xf32> to vector<4x1xf32>
    %248 = vector.extract_strided_slice %246 {offsets = [0, 0], sizes = [1, 256], strides = [1, 1]} : vector<2x256xf32> to vector<1x256xf32>
    %249 = vector.broadcast %247 : vector<4x1xf32> to vector<4x256xf32>
    %250 = vector.broadcast %248 : vector<1x256xf32> to vector<4x256xf32>
    %251 = arith.mulf %249, %250 : vector<4x256xf32>
    %252 = arith.addf %245, %251 : vector<4x256xf32>
    %253 = vector.extract_strided_slice %1 {offsets = [0, 17], sizes = [4, 1], strides = [1, 1]} : vector<4x18xf32> to vector<4x1xf32>
    %254 = vector.extract_strided_slice %246 {offsets = [1, 0], sizes = [1, 256], strides = [1, 1]} : vector<2x256xf32> to vector<1x256xf32>
    %255 = vector.broadcast %253 : vector<4x1xf32> to vector<4x256xf32>
    %256 = vector.broadcast %254 : vector<1x256xf32> to vector<4x256xf32>
    %257 = arith.mulf %255, %256 : vector<4x256xf32>
    %258 = arith.addf %252, %257 : vector<4x256xf32>
    %259 = vector.broadcast %0 : vector<4x1xf32> to vector<4x256xf32>
    %260 = arith.addf %258, %259 : vector<4x256xf32>
    %c4 = arith.constant 4 : index
    %c0_24 = arith.constant 0 : index
    %261 = vector.load %arg5[%c4, %c0_24] : memref<16x256xf32, #tpu.memory_space<vmem>>, vector<4x256xf32>
    tpu.vector_store %arg5[%c4, %c0_24], %260 {strides = array<i32>} : memref<16x256xf32, #tpu.memory_space<vmem>>, vector<4x256xf32>,
    %cst_25 = arith.constant 0.000000e+00 : f32
    %262 = vector.broadcast %cst_25 : f32 to vector<4x256xf32>
    %c4_26 = arith.constant 4 : index
    %c0_27 = arith.constant 0 : index
    %263 = vector.load %arg1[%c4_26, %c0_27] : memref<8x290xf32, #tpu.memory_space<vmem>>, vector<2x288xf32>
    %c0_28 = arith.constant 0 : index
    %c0_29 = arith.constant 0 : index
    %264 = vector.load %arg2[%c0_28, %c0_29] : memref<3x288xf32, #tpu.memory_space<vmem>>, vector<1x288xf32>
    %265 = vector.broadcast %264 : vector<1x288xf32> to vector<2x288xf32>
    %266 = arith.mulf %263, %265 : vector<2x288xf32>
    %267 = vector.extract_strided_slice %266 {offsets = [0, 0], sizes = [2, 256], strides = [1, 1]} : vector<2x288xf32> to vector<2x256xf32>
    %268 = vector.extract_strided_slice %1 {offsets = [0, 0], sizes = [4, 1], strides = [1, 1]} : vector<4x18xf32> to vector<4x1xf32>
    %269 = vector.extract_strided_slice %267 {offsets = [0, 0], sizes = [1, 256], strides = [1, 1]} : vector<2x256xf32> to vector<1x256xf32>
    %270 = vector.broadcast %268 : vector<4x1xf32> to vector<4x256xf32>
    %271 = vector.broadcast %269 : vector<1x256xf32> to vector<4x256xf32>
    %272 = arith.mulf %270, %271 : vector<4x256xf32>
    %273 = arith.addf %262, %272 : vector<4x256xf32>
    %274 = vector.extract_strided_slice %1 {offsets = [0, 1], sizes = [4, 1], strides = [1, 1]} : vector<4x18xf32> to vector<4x1xf32>
    %275 = vector.extract_strided_slice %267 {offsets = [1, 0], sizes = [1, 256], strides = [1, 1]} : vector<2x256xf32> to vector<1x256xf32>
    %276 = vector.broadcast %274 : vector<4x1xf32> to vector<4x256xf32>
    %277 = vector.broadcast %275 : vector<1x256xf32> to vector<4x256xf32>
    %278 = arith.mulf %276, %277 : vector<4x256xf32>
    %279 = arith.addf %273, %278 : vector<4x256xf32>
    %280 = vector.extract_strided_slice %266 {offsets = [0, 16], sizes = [2, 256], strides = [1, 1]} : vector<2x288xf32> to vector<2x256xf32>
    %281 = vector.extract_strided_slice %1 {offsets = [0, 2], sizes = [4, 1], strides = [1, 1]} : vector<4x18xf32> to vector<4x1xf32>
    %282 = vector.extract_strided_slice %280 {offsets = [0, 0], sizes = [1, 256], strides = [1, 1]} : vector<2x256xf32> to vector<1x256xf32>
    %283 = vector.broadcast %281 : vector<4x1xf32> to vector<4x256xf32>
    %284 = vector.broadcast %282 : vector<1x256xf32> to vector<4x256xf32>
    %285 = arith.mulf %283, %284 : vector<4x256xf32>
    %286 = arith.addf %279, %285 : vector<4x256xf32>
    %287 = vector.extract_strided_slice %1 {offsets = [0, 3], sizes = [4, 1], strides = [1, 1]} : vector<4x18xf32> to vector<4x1xf32>
    %288 = vector.extract_strided_slice %280 {offsets = [1, 0], sizes = [1, 256], strides = [1, 1]} : vector<2x256xf32> to vector<1x256xf32>
    %289 = vector.broadcast %287 : vector<4x1xf32> to vector<4x256xf32>
    %290 = vector.broadcast %288 : vector<1x256xf32> to vector<4x256xf32>
    %291 = arith.mulf %289, %290 : vector<4x256xf32>
    %292 = arith.addf %286, %291 : vector<4x256xf32>
    %293 = vector.extract_strided_slice %266 {offsets = [0, 32], sizes = [2, 256], strides = [1, 1]} : vector<2x288xf32> to vector<2x256xf32>
    %294 = vector.extract_strided_slice %1 {offsets = [0, 4], sizes = [4, 1], strides = [1, 1]} : vector<4x18xf32> to vector<4x1xf32>
    %295 = vector.extract_strided_slice %293 {offsets = [0, 0], sizes = [1, 256], strides = [1, 1]} : vector<2x256xf32> to vector<1x256xf32>
    %296 = vector.broadcast %294 : vector<4x1xf32> to vector<4x256xf32>
    %297 = vector.broadcast %295 : vector<1x256xf32> to vector<4x256xf32>
    %298 = arith.mulf %296, %297 : vector<4x256xf32>
    %299 = arith.addf %292, %298 : vector<4x256xf32>
    %300 = vector.extract_strided_slice %1 {offsets = [0, 5], sizes = [4, 1], strides = [1, 1]} : vector<4x18xf32> to vector<4x1xf32>
    %301 = vector.extract_strided_slice %293 {offsets = [1, 0], sizes = [1, 256], strides = [1, 1]} : vector<2x256xf32> to vector<1x256xf32>
    %302 = vector.broadcast %300 : vector<4x1xf32> to vector<4x256xf32>
    %303 = vector.broadcast %301 : vector<1x256xf32> to vector<4x256xf32>
    %304 = arith.mulf %302, %303 : vector<4x256xf32>
    %305 = arith.addf %299, %304 : vector<4x256xf32>
    %c4_30 = arith.constant 4 : index
    %c1_31 = arith.constant 1 : index
    %306 = vector.load %arg1[%c4_30, %c1_31] : memref<8x290xf32, #tpu.memory_space<vmem>>, vector<2x288xf32>
    %307 = vector.extract_strided_slice %306 {offsets = [0, 0], sizes = [2, 256], strides = [1, 1]} : vector<2x288xf32> to vector<2x256xf32>
    %308 = vector.extract_strided_slice %1 {offsets = [0, 6], sizes = [4, 1], strides = [1, 1]} : vector<4x18xf32> to vector<4x1xf32>
    %309 = vector.extract_strided_slice %307 {offsets = [0, 0], sizes = [1, 256], strides = [1, 1]} : vector<2x256xf32> to vector<1x256xf32>
    %310 = vector.broadcast %308 : vector<4x1xf32> to vector<4x256xf32>
    %311 = vector.broadcast %309 : vector<1x256xf32> to vector<4x256xf32>
    %312 = arith.mulf %310, %311 : vector<4x256xf32>
    %313 = arith.addf %305, %312 : vector<4x256xf32>
    %314 = vector.extract_strided_slice %1 {offsets = [0, 7], sizes = [4, 1], strides = [1, 1]} : vector<4x18xf32> to vector<4x1xf32>
    %315 = vector.extract_strided_slice %307 {offsets = [1, 0], sizes = [1, 256], strides = [1, 1]} : vector<2x256xf32> to vector<1x256xf32>
    %316 = vector.broadcast %314 : vector<4x1xf32> to vector<4x256xf32>
    %317 = vector.broadcast %315 : vector<1x256xf32> to vector<4x256xf32>
    %318 = arith.mulf %316, %317 : vector<4x256xf32>
    %319 = arith.addf %313, %318 : vector<4x256xf32>
    %320 = vector.extract_strided_slice %306 {offsets = [0, 16], sizes = [2, 256], strides = [1, 1]} : vector<2x288xf32> to vector<2x256xf32>
    %321 = vector.extract_strided_slice %1 {offsets = [0, 8], sizes = [4, 1], strides = [1, 1]} : vector<4x18xf32> to vector<4x1xf32>
    %322 = vector.extract_strided_slice %320 {offsets = [0, 0], sizes = [1, 256], strides = [1, 1]} : vector<2x256xf32> to vector<1x256xf32>
    %323 = vector.broadcast %321 : vector<4x1xf32> to vector<4x256xf32>
    %324 = vector.broadcast %322 : vector<1x256xf32> to vector<4x256xf32>
    %325 = arith.mulf %323, %324 : vector<4x256xf32>
    %326 = arith.addf %319, %325 : vector<4x256xf32>
    %327 = vector.extract_strided_slice %1 {offsets = [0, 9], sizes = [4, 1], strides = [1, 1]} : vector<4x18xf32> to vector<4x1xf32>
    %328 = vector.extract_strided_slice %320 {offsets = [1, 0], sizes = [1, 256], strides = [1, 1]} : vector<2x256xf32> to vector<1x256xf32>
    %329 = vector.broadcast %327 : vector<4x1xf32> to vector<4x256xf32>
    %330 = vector.broadcast %328 : vector<1x256xf32> to vector<4x256xf32>
    %331 = arith.mulf %329, %330 : vector<4x256xf32>
    %332 = arith.addf %326, %331 : vector<4x256xf32>
    %333 = vector.extract_strided_slice %306 {offsets = [0, 32], sizes = [2, 256], strides = [1, 1]} : vector<2x288xf32> to vector<2x256xf32>
    %334 = vector.extract_strided_slice %1 {offsets = [0, 10], sizes = [4, 1], strides = [1, 1]} : vector<4x18xf32> to vector<4x1xf32>
    %335 = vector.extract_strided_slice %333 {offsets = [0, 0], sizes = [1, 256], strides = [1, 1]} : vector<2x256xf32> to vector<1x256xf32>
    %336 = vector.broadcast %334 : vector<4x1xf32> to vector<4x256xf32>
    %337 = vector.broadcast %335 : vector<1x256xf32> to vector<4x256xf32>
    %338 = arith.mulf %336, %337 : vector<4x256xf32>
    %339 = arith.addf %332, %338 : vector<4x256xf32>
    %340 = vector.extract_strided_slice %1 {offsets = [0, 11], sizes = [4, 1], strides = [1, 1]} : vector<4x18xf32> to vector<4x1xf32>
    %341 = vector.extract_strided_slice %333 {offsets = [1, 0], sizes = [1, 256], strides = [1, 1]} : vector<2x256xf32> to vector<1x256xf32>
    %342 = vector.broadcast %340 : vector<4x1xf32> to vector<4x256xf32>
    %343 = vector.broadcast %341 : vector<1x256xf32> to vector<4x256xf32>
    %344 = arith.mulf %342, %343 : vector<4x256xf32>
    %345 = arith.addf %339, %344 : vector<4x256xf32>
    %c4_32 = arith.constant 4 : index
    %c2_33 = arith.constant 2 : index
    %346 = vector.load %arg1[%c4_32, %c2_33] : memref<8x290xf32, #tpu.memory_space<vmem>>, vector<2x288xf32>
    %c2_34 = arith.constant 2 : index
    %c0_35 = arith.constant 0 : index
    %347 = vector.load %arg2[%c2_34, %c0_35] : memref<3x288xf32, #tpu.memory_space<vmem>>, vector<1x288xf32>
    %348 = vector.broadcast %347 : vector<1x288xf32> to vector<2x288xf32>
    %349 = arith.mulf %346, %348 : vector<2x288xf32>
    %350 = vector.extract_strided_slice %349 {offsets = [0, 0], sizes = [2, 256], strides = [1, 1]} : vector<2x288xf32> to vector<2x256xf32>
    %351 = vector.extract_strided_slice %1 {offsets = [0, 12], sizes = [4, 1], strides = [1, 1]} : vector<4x18xf32> to vector<4x1xf32>
    %352 = vector.extract_strided_slice %350 {offsets = [0, 0], sizes = [1, 256], strides = [1, 1]} : vector<2x256xf32> to vector<1x256xf32>
    %353 = vector.broadcast %351 : vector<4x1xf32> to vector<4x256xf32>
    %354 = vector.broadcast %352 : vector<1x256xf32> to vector<4x256xf32>
    %355 = arith.mulf %353, %354 : vector<4x256xf32>
    %356 = arith.addf %345, %355 : vector<4x256xf32>
    %357 = vector.extract_strided_slice %1 {offsets = [0, 13], sizes = [4, 1], strides = [1, 1]} : vector<4x18xf32> to vector<4x1xf32>
    %358 = vector.extract_strided_slice %350 {offsets = [1, 0], sizes = [1, 256], strides = [1, 1]} : vector<2x256xf32> to vector<1x256xf32>
    %359 = vector.broadcast %357 : vector<4x1xf32> to vector<4x256xf32>
    %360 = vector.broadcast %358 : vector<1x256xf32> to vector<4x256xf32>
    %361 = arith.mulf %359, %360 : vector<4x256xf32>
    %362 = arith.addf %356, %361 : vector<4x256xf32>
    %363 = vector.extract_strided_slice %349 {offsets = [0, 16], sizes = [2, 256], strides = [1, 1]} : vector<2x288xf32> to vector<2x256xf32>
    %364 = vector.extract_strided_slice %1 {offsets = [0, 14], sizes = [4, 1], strides = [1, 1]} : vector<4x18xf32> to vector<4x1xf32>
    %365 = vector.extract_strided_slice %363 {offsets = [0, 0], sizes = [1, 256], strides = [1, 1]} : vector<2x256xf32> to vector<1x256xf32>
    %366 = vector.broadcast %364 : vector<4x1xf32> to vector<4x256xf32>
    %367 = vector.broadcast %365 : vector<1x256xf32> to vector<4x256xf32>
    %368 = arith.mulf %366, %367 : vector<4x256xf32>
    %369 = arith.addf %362, %368 : vector<4x256xf32>
    %370 = vector.extract_strided_slice %1 {offsets = [0, 15], sizes = [4, 1], strides = [1, 1]} : vector<4x18xf32> to vector<4x1xf32>
    %371 = vector.extract_strided_slice %363 {offsets = [1, 0], sizes = [1, 256], strides = [1, 1]} : vector<2x256xf32> to vector<1x256xf32>
    %372 = vector.broadcast %370 : vector<4x1xf32> to vector<4x256xf32>
    %373 = vector.broadcast %371 : vector<1x256xf32> to vector<4x256xf32>
    %374 = arith.mulf %372, %373 : vector<4x256xf32>
    %375 = arith.addf %369, %374 : vector<4x256xf32>
    %376 = vector.extract_strided_slice %349 {offsets = [0, 32], sizes = [2, 256], strides = [1, 1]} : vector<2x288xf32> to vector<2x256xf32>
    %377 = vector.extract_strided_slice %1 {offsets = [0, 16], sizes = [4, 1], strides = [1, 1]} : vector<4x18xf32> to vector<4x1xf32>
    %378 = vector.extract_strided_slice %376 {offsets = [0, 0], sizes = [1, 256], strides = [1, 1]} : vector<2x256xf32> to vector<1x256xf32>
    %379 = vector.broadcast %377 : vector<4x1xf32> to vector<4x256xf32>
    %380 = vector.broadcast %378 : vector<1x256xf32> to vector<4x256xf32>
    %381 = arith.mulf %379, %380 : vector<4x256xf32>
    %382 = arith.addf %375, %381 : vector<4x256xf32>
    %383 = vector.extract_strided_slice %1 {offsets = [0, 17], sizes = [4, 1], strides = [1, 1]} : vector<4x18xf32> to vector<4x1xf32>
    %384 = vector.extract_strided_slice %376 {offsets = [1, 0], sizes = [1, 256], strides = [1, 1]} : vector<2x256xf32> to vector<1x256xf32>
    %385 = vector.broadcast %383 : vector<4x1xf32> to vector<4x256xf32>
    %386 = vector.broadcast %384 : vector<1x256xf32> to vector<4x256xf32>
    %387 = arith.mulf %385, %386 : vector<4x256xf32>
    %388 = arith.addf %382, %387 : vector<4x256xf32>
    %389 = vector.broadcast %0 : vector<4x1xf32> to vector<4x256xf32>
    %390 = arith.addf %388, %389 : vector<4x256xf32>
    %c8 = arith.constant 8 : index
    %c0_36 = arith.constant 0 : index
    %391 = vector.load %arg5[%c8, %c0_36] : memref<16x256xf32, #tpu.memory_space<vmem>>, vector<4x256xf32>
    tpu.vector_store %arg5[%c8, %c0_36], %390 {strides = array<i32>} : memref<16x256xf32, #tpu.memory_space<vmem>>, vector<4x256xf32>,
    %cst_37 = arith.constant 0.000000e+00 : f32
    %392 = vector.broadcast %cst_37 : f32 to vector<4x256xf32>
    %c6 = arith.constant 6 : index
    %c0_38 = arith.constant 0 : index
    %393 = vector.load %arg1[%c6, %c0_38] : memref<8x290xf32, #tpu.memory_space<vmem>>, vector<2x288xf32>
    %c0_39 = arith.constant 0 : index
    %c0_40 = arith.constant 0 : index
    %394 = vector.load %arg2[%c0_39, %c0_40] : memref<3x288xf32, #tpu.memory_space<vmem>>, vector<1x288xf32>
    %395 = vector.broadcast %394 : vector<1x288xf32> to vector<2x288xf32>
    %396 = arith.mulf %393, %395 : vector<2x288xf32>
    %397 = vector.extract_strided_slice %396 {offsets = [0, 0], sizes = [2, 256], strides = [1, 1]} : vector<2x288xf32> to vector<2x256xf32>
    %398 = vector.extract_strided_slice %1 {offsets = [0, 0], sizes = [4, 1], strides = [1, 1]} : vector<4x18xf32> to vector<4x1xf32>
    %399 = vector.extract_strided_slice %397 {offsets = [0, 0], sizes = [1, 256], strides = [1, 1]} : vector<2x256xf32> to vector<1x256xf32>
    %400 = vector.broadcast %398 : vector<4x1xf32> to vector<4x256xf32>
    %401 = vector.broadcast %399 : vector<1x256xf32> to vector<4x256xf32>
    %402 = arith.mulf %400, %401 : vector<4x256xf32>
    %403 = arith.addf %392, %402 : vector<4x256xf32>
    %404 = vector.extract_strided_slice %1 {offsets = [0, 1], sizes = [4, 1], strides = [1, 1]} : vector<4x18xf32> to vector<4x1xf32>
    %405 = vector.extract_strided_slice %397 {offsets = [1, 0], sizes = [1, 256], strides = [1, 1]} : vector<2x256xf32> to vector<1x256xf32>
    %406 = vector.broadcast %404 : vector<4x1xf32> to vector<4x256xf32>
    %407 = vector.broadcast %405 : vector<1x256xf32> to vector<4x256xf32>
    %408 = arith.mulf %406, %407 : vector<4x256xf32>
    %409 = arith.addf %403, %408 : vector<4x256xf32>
    %410 = vector.extract_strided_slice %396 {offsets = [0, 16], sizes = [2, 256], strides = [1, 1]} : vector<2x288xf32> to vector<2x256xf32>
    %411 = vector.extract_strided_slice %1 {offsets = [0, 2], sizes = [4, 1], strides = [1, 1]} : vector<4x18xf32> to vector<4x1xf32>
    %412 = vector.extract_strided_slice %410 {offsets = [0, 0], sizes = [1, 256], strides = [1, 1]} : vector<2x256xf32> to vector<1x256xf32>
    %413 = vector.broadcast %411 : vector<4x1xf32> to vector<4x256xf32>
    %414 = vector.broadcast %412 : vector<1x256xf32> to vector<4x256xf32>
    %415 = arith.mulf %413, %414 : vector<4x256xf32>
    %416 = arith.addf %409, %415 : vector<4x256xf32>
    %417 = vector.extract_strided_slice %1 {offsets = [0, 3], sizes = [4, 1], strides = [1, 1]} : vector<4x18xf32> to vector<4x1xf32>
    %418 = vector.extract_strided_slice %410 {offsets = [1, 0], sizes = [1, 256], strides = [1, 1]} : vector<2x256xf32> to vector<1x256xf32>
    %419 = vector.broadcast %417 : vector<4x1xf32> to vector<4x256xf32>
    %420 = vector.broadcast %418 : vector<1x256xf32> to vector<4x256xf32>
    %421 = arith.mulf %419, %420 : vector<4x256xf32>
    %422 = arith.addf %416, %421 : vector<4x256xf32>
    %423 = vector.extract_strided_slice %396 {offsets = [0, 32], sizes = [2, 256], strides = [1, 1]} : vector<2x288xf32> to vector<2x256xf32>
    %424 = vector.extract_strided_slice %1 {offsets = [0, 4], sizes = [4, 1], strides = [1, 1]} : vector<4x18xf32> to vector<4x1xf32>
    %425 = vector.extract_strided_slice %423 {offsets = [0, 0], sizes = [1, 256], strides = [1, 1]} : vector<2x256xf32> to vector<1x256xf32>
    %426 = vector.broadcast %424 : vector<4x1xf32> to vector<4x256xf32>
    %427 = vector.broadcast %425 : vector<1x256xf32> to vector<4x256xf32>
    %428 = arith.mulf %426, %427 : vector<4x256xf32>
    %429 = arith.addf %422, %428 : vector<4x256xf32>
    %430 = vector.extract_strided_slice %1 {offsets = [0, 5], sizes = [4, 1], strides = [1, 1]} : vector<4x18xf32> to vector<4x1xf32>
    %431 = vector.extract_strided_slice %423 {offsets = [1, 0], sizes = [1, 256], strides = [1, 1]} : vector<2x256xf32> to vector<1x256xf32>
    %432 = vector.broadcast %430 : vector<4x1xf32> to vector<4x256xf32>
    %433 = vector.broadcast %431 : vector<1x256xf32> to vector<4x256xf32>
    %434 = arith.mulf %432, %433 : vector<4x256xf32>
    %435 = arith.addf %429, %434 : vector<4x256xf32>
    %c6_41 = arith.constant 6 : index
    %c1_42 = arith.constant 1 : index
    %436 = vector.load %arg1[%c6_41, %c1_42] : memref<8x290xf32, #tpu.memory_space<vmem>>, vector<2x288xf32>
    %437 = vector.extract_strided_slice %436 {offsets = [0, 0], sizes = [2, 256], strides = [1, 1]} : vector<2x288xf32> to vector<2x256xf32>
    %438 = vector.extract_strided_slice %1 {offsets = [0, 6], sizes = [4, 1], strides = [1, 1]} : vector<4x18xf32> to vector<4x1xf32>
    %439 = vector.extract_strided_slice %437 {offsets = [0, 0], sizes = [1, 256], strides = [1, 1]} : vector<2x256xf32> to vector<1x256xf32>
    %440 = vector.broadcast %438 : vector<4x1xf32> to vector<4x256xf32>
    %441 = vector.broadcast %439 : vector<1x256xf32> to vector<4x256xf32>
    %442 = arith.mulf %440, %441 : vector<4x256xf32>
    %443 = arith.addf %435, %442 : vector<4x256xf32>
    %444 = vector.extract_strided_slice %1 {offsets = [0, 7], sizes = [4, 1], strides = [1, 1]} : vector<4x18xf32> to vector<4x1xf32>
    %445 = vector.extract_strided_slice %437 {offsets = [1, 0], sizes = [1, 256], strides = [1, 1]} : vector<2x256xf32> to vector<1x256xf32>
    %446 = vector.broadcast %444 : vector<4x1xf32> to vector<4x256xf32>
    %447 = vector.broadcast %445 : vector<1x256xf32> to vector<4x256xf32>
    %448 = arith.mulf %446, %447 : vector<4x256xf32>
    %449 = arith.addf %443, %448 : vector<4x256xf32>
    %450 = vector.extract_strided_slice %436 {offsets = [0, 16], sizes = [2, 256], strides = [1, 1]} : vector<2x288xf32> to vector<2x256xf32>
    %451 = vector.extract_strided_slice %1 {offsets = [0, 8], sizes = [4, 1], strides = [1, 1]} : vector<4x18xf32> to vector<4x1xf32>
    %452 = vector.extract_strided_slice %450 {offsets = [0, 0], sizes = [1, 256], strides = [1, 1]} : vector<2x256xf32> to vector<1x256xf32>
    %453 = vector.broadcast %451 : vector<4x1xf32> to vector<4x256xf32>
    %454 = vector.broadcast %452 : vector<1x256xf32> to vector<4x256xf32>
    %455 = arith.mulf %453, %454 : vector<4x256xf32>
    %456 = arith.addf %449, %455 : vector<4x256xf32>
    %457 = vector.extract_strided_slice %1 {offsets = [0, 9], sizes = [4, 1], strides = [1, 1]} : vector<4x18xf32> to vector<4x1xf32>
    %458 = vector.extract_strided_slice %450 {offsets = [1, 0], sizes = [1, 256], strides = [1, 1]} : vector<2x256xf32> to vector<1x256xf32>
    %459 = vector.broadcast %457 : vector<4x1xf32> to vector<4x256xf32>
    %460 = vector.broadcast %458 : vector<1x256xf32> to vector<4x256xf32>
    %461 = arith.mulf %459, %460 : vector<4x256xf32>
    %462 = arith.addf %456, %461 : vector<4x256xf32>
    %463 = vector.extract_strided_slice %436 {offsets = [0, 32], sizes = [2, 256], strides = [1, 1]} : vector<2x288xf32> to vector<2x256xf32>
    %464 = vector.extract_strided_slice %1 {offsets = [0, 10], sizes = [4, 1], strides = [1, 1]} : vector<4x18xf32> to vector<4x1xf32>
    %465 = vector.extract_strided_slice %463 {offsets = [0, 0], sizes = [1, 256], strides = [1, 1]} : vector<2x256xf32> to vector<1x256xf32>
    %466 = vector.broadcast %464 : vector<4x1xf32> to vector<4x256xf32>
    %467 = vector.broadcast %465 : vector<1x256xf32> to vector<4x256xf32>
    %468 = arith.mulf %466, %467 : vector<4x256xf32>
    %469 = arith.addf %462, %468 : vector<4x256xf32>
    %470 = vector.extract_strided_slice %1 {offsets = [0, 11], sizes = [4, 1], strides = [1, 1]} : vector<4x18xf32> to vector<4x1xf32>
    %471 = vector.extract_strided_slice %463 {offsets = [1, 0], sizes = [1, 256], strides = [1, 1]} : vector<2x256xf32> to vector<1x256xf32>
    %472 = vector.broadcast %470 : vector<4x1xf32> to vector<4x256xf32>
    %473 = vector.broadcast %471 : vector<1x256xf32> to vector<4x256xf32>
    %474 = arith.mulf %472, %473 : vector<4x256xf32>
    %475 = arith.addf %469, %474 : vector<4x256xf32>
    %c6_43 = arith.constant 6 : index
    %c2_44 = arith.constant 2 : index
    %476 = vector.load %arg1[%c6_43, %c2_44] : memref<8x290xf32, #tpu.memory_space<vmem>>, vector<2x288xf32>
    %c2_45 = arith.constant 2 : index
    %c0_46 = arith.constant 0 : index
    %477 = vector.load %arg2[%c2_45, %c0_46] : memref<3x288xf32, #tpu.memory_space<vmem>>, vector<1x288xf32>
    %478 = vector.broadcast %477 : vector<1x288xf32> to vector<2x288xf32>
    %479 = arith.mulf %476, %478 : vector<2x288xf32>
    %480 = vector.extract_strided_slice %479 {offsets = [0, 0], sizes = [2, 256], strides = [1, 1]} : vector<2x288xf32> to vector<2x256xf32>
    %481 = vector.extract_strided_slice %1 {offsets = [0, 12], sizes = [4, 1], strides = [1, 1]} : vector<4x18xf32> to vector<4x1xf32>
    %482 = vector.extract_strided_slice %480 {offsets = [0, 0], sizes = [1, 256], strides = [1, 1]} : vector<2x256xf32> to vector<1x256xf32>
    %483 = vector.broadcast %481 : vector<4x1xf32> to vector<4x256xf32>
    %484 = vector.broadcast %482 : vector<1x256xf32> to vector<4x256xf32>
    %485 = arith.mulf %483, %484 : vector<4x256xf32>
    %486 = arith.addf %475, %485 : vector<4x256xf32>
    %487 = vector.extract_strided_slice %1 {offsets = [0, 13], sizes = [4, 1], strides = [1, 1]} : vector<4x18xf32> to vector<4x1xf32>
    %488 = vector.extract_strided_slice %480 {offsets = [1, 0], sizes = [1, 256], strides = [1, 1]} : vector<2x256xf32> to vector<1x256xf32>
    %489 = vector.broadcast %487 : vector<4x1xf32> to vector<4x256xf32>
    %490 = vector.broadcast %488 : vector<1x256xf32> to vector<4x256xf32>
    %491 = arith.mulf %489, %490 : vector<4x256xf32>
    %492 = arith.addf %486, %491 : vector<4x256xf32>
    %493 = vector.extract_strided_slice %479 {offsets = [0, 16], sizes = [2, 256], strides = [1, 1]} : vector<2x288xf32> to vector<2x256xf32>
    %494 = vector.extract_strided_slice %1 {offsets = [0, 14], sizes = [4, 1], strides = [1, 1]} : vector<4x18xf32> to vector<4x1xf32>
    %495 = vector.extract_strided_slice %493 {offsets = [0, 0], sizes = [1, 256], strides = [1, 1]} : vector<2x256xf32> to vector<1x256xf32>
    %496 = vector.broadcast %494 : vector<4x1xf32> to vector<4x256xf32>
    %497 = vector.broadcast %495 : vector<1x256xf32> to vector<4x256xf32>
    %498 = arith.mulf %496, %497 : vector<4x256xf32>
    %499 = arith.addf %492, %498 : vector<4x256xf32>
    %500 = vector.extract_strided_slice %1 {offsets = [0, 15], sizes = [4, 1], strides = [1, 1]} : vector<4x18xf32> to vector<4x1xf32>
    %501 = vector.extract_strided_slice %493 {offsets = [1, 0], sizes = [1, 256], strides = [1, 1]} : vector<2x256xf32> to vector<1x256xf32>
    %502 = vector.broadcast %500 : vector<4x1xf32> to vector<4x256xf32>
    %503 = vector.broadcast %501 : vector<1x256xf32> to vector<4x256xf32>
    %504 = arith.mulf %502, %503 : vector<4x256xf32>
    %505 = arith.addf %499, %504 : vector<4x256xf32>
    %506 = vector.extract_strided_slice %479 {offsets = [0, 32], sizes = [2, 256], strides = [1, 1]} : vector<2x288xf32> to vector<2x256xf32>
    %507 = vector.extract_strided_slice %1 {offsets = [0, 16], sizes = [4, 1], strides = [1, 1]} : vector<4x18xf32> to vector<4x1xf32>
    %508 = vector.extract_strided_slice %506 {offsets = [0, 0], sizes = [1, 256], strides = [1, 1]} : vector<2x256xf32> to vector<1x256xf32>
    %509 = vector.broadcast %507 : vector<4x1xf32> to vector<4x256xf32>
    %510 = vector.broadcast %508 : vector<1x256xf32> to vector<4x256xf32>
    %511 = arith.mulf %509, %510 : vector<4x256xf32>
    %512 = arith.addf %505, %511 : vector<4x256xf32>
    %513 = vector.extract_strided_slice %1 {offsets = [0, 17], sizes = [4, 1], strides = [1, 1]} : vector<4x18xf32> to vector<4x1xf32>
    %514 = vector.extract_strided_slice %506 {offsets = [1, 0], sizes = [1, 256], strides = [1, 1]} : vector<2x256xf32> to vector<1x256xf32>
    %515 = vector.broadcast %513 : vector<4x1xf32> to vector<4x256xf32>
    %516 = vector.broadcast %514 : vector<1x256xf32> to vector<4x256xf32>
    %517 = arith.mulf %515, %516 : vector<4x256xf32>
    %518 = arith.addf %512, %517 : vector<4x256xf32>
    %519 = vector.broadcast %0 : vector<4x1xf32> to vector<4x256xf32>
    %520 = arith.addf %518, %519 : vector<4x256xf32>
    %c12 = arith.constant 12 : index
    %c0_47 = arith.constant 0 : index
    %521 = vector.load %arg5[%c12, %c0_47] : memref<16x256xf32, #tpu.memory_space<vmem>>, vector<4x256xf32>
    tpu.vector_store %arg5[%c12, %c0_47], %520 {strides = array<i32>} : memref<16x256xf32, #tpu.memory_space<vmem>>, vector<4x256xf32>,
    return
  }
  func.func @transform_0(%arg0: i32) -> (i32, i32) {
    %c0_i32 = arith.constant 0 : i32
    %c0_i32_0 = arith.constant 0 : i32
    return %arg0, %c0_i32 : i32, i32
  }
  func.func @transform_1(%arg0: i32) -> (i32, i32) {
    %c0_i32 = arith.constant 0 : i32
    %c0_i32_0 = arith.constant 0 : i32
    %c0_i32_1 = arith.constant 0 : i32
    return %c0_i32, %c0_i32_0 : i32, i32
  }
  func.func @transform_2(%arg0: i32) -> (i32, i32) {
    %c0_i32 = arith.constant 0 : i32
    %c0_i32_0 = arith.constant 0 : i32
    %c0_i32_1 = arith.constant 0 : i32
    return %c0_i32, %c0_i32_0 : i32, i32
  }
  func.func @transform_3(%arg0: i32) -> (i32, i32) {
    %c0_i32 = arith.constant 0 : i32
    %c0_i32_0 = arith.constant 0 : i32
    %c0_i32_1 = arith.constant 0 : i32
    return %c0_i32, %c0_i32_0 : i32, i32
  }
  func.func @transform_4(%arg0: i32) -> (i32, i32) {
    %c0_i32 = arith.constant 0 : i32
    %c0_i32_0 = arith.constant 0 : i32
    return %arg0, %c0_i32 : i32, i32
  }
}

</mosaic_0001>

<llo_original>
// kernel: tpu_custom_call.1
$region0: #{tpu_custom_call.1}
  #allocation0 [shape = 'u32[]', space=smem, size = 0x4, offset = 0x4, fixed_abs, tag = 'smem constant byte address 0x4 - core index']
  #allocation1 [shape = 'u32[144,128]{1,0:T(1,128)}', space=vmem, size = 0x12000, scoped, tag = 'internal scratch']
  %s0 = inlined_call_operand.hbm [shape: f32[8,290], index: 0, kind: input, shape index: {}]
  %s1 = inlined_call_operand.hbm [shape: f32[3,288], index: 1, kind: input, shape index: {}]
  %s2 = inlined_call_operand.vmem [shape: f32[4,18], index: 2, kind: input, shape index: {}]
  %s3 = inlined_call_operand.vmem [shape: f32[4,1], index: 3, kind: input, shape index: {}]
  %s4 = inlined_call_operand.hbm [shape: f32[16,256], index: 4, kind: output, shape index: {}]
  %s5 = sld [smem:[#allocation0]]
  $region34: #{tpu_custom_call.1} parent=0
    _
  %s7 = ssub.s32 1, %s5
  %s8 = scalar_select 0, %s7, %s5
  $region1: #{tpu_custom_call.1} parent=0
    #allocation2 [shape = 'u8[12288]{0}', space=vmem, size = 0x3000, scoped, tag = 'input window, operand 0, single buffered']
    #allocation3 [shape = 's32[1]{0}', space=sflag, size = 0x4, scoped, tag = 'scoped memory for tpu_custom_call.1']
    #allocation4 [shape = 's32[1]{0}', space=sflag, size = 0x4, scoped, tag = 'scoped memory for tpu_custom_call.1']
    #allocation5 [shape = 'u8[6144]{0}', space=vmem, size = 0x1800, scoped, tag = 'input window, operand 1, single buffered']
    #allocation6 [shape = 's32[1]{0}', space=sflag, size = 0x4, scoped, tag = 'scoped memory for tpu_custom_call.1']
    #allocation7 [shape = 'u8[16384]{0}', space=vmem, size = 0x4000, scoped, tag = 'output window, operand 0, single buffered']
    %9 = vsyncpa [#allocation3], 0
    %10 = vsyncpa [#allocation6], 0
    %11 = vsyncpa [#allocation4], 0
    // Predicated region
    $region2: #{tpu_custom_call.1} parent=1 // pred_check
      _
    $region3: #{tpu_custom_call.1} parent=1 // pred_check_branch
      %13 = sbr.rel (0) target = $region5
    $region4: #{tpu_custom_call.1} parent=1 // pred_region
      %s15 = ssub.s32 384, 384
      %16 = vsyncadd [#allocation3], %s15
      %s18 = sshll.u32 [#allocation2], 4
      %s19 = int_to_ptr.vmem [resolvable:$true] %s18
      %21 = dma.hbm_to_vmem [thread:$0]  %s0, 384, %s19, [#allocation3]
    $region5: #{tpu_custom_call.1} parent=1 // pred_fallthru
      _
    // Predicated region
    $region6: #{tpu_custom_call.1} parent=1 // pred_check
      _
    $region7: #{tpu_custom_call.1} parent=1 // pred_check_branch
      %23 = sbr.rel (0) target = $region9
    $region8: #{tpu_custom_call.1} parent=1 // pred_region
      %s25 = ssub.s32 192, 192
      %26 = vsyncadd [#allocation6], %s25
      %s28 = sshll.u32 [#allocation5], 4
      %s29 = int_to_ptr.vmem [resolvable:$true] %s28
      %31 = dma.hbm_to_vmem [thread:$0]  %s1, 192, %s29, [#allocation6]
    $region9: #{tpu_custom_call.1} parent=1 // pred_fallthru
      _
    // Predicated region
    $region10: #{tpu_custom_call.1} parent=1 // pred_check
      _
    $region11: #{tpu_custom_call.1} parent=1 // pred_check_branch
      %33 = sbr.rel (0) target = $region13
    $region12: #{tpu_custom_call.1} parent=1 // pred_region
      _
    $region13: #{tpu_custom_call.1} parent=1 // pred_fallthru
      _
    // Predicated region
    $region14: #{tpu_custom_call.1} parent=1 // pred_check
      _
    $region15: #{tpu_custom_call.1} parent=1 // pred_check_branch
      %35 = sbr.rel (0) target = $region17
    $region16: #{tpu_custom_call.1} parent=1 // pred_region
      _
    $region17: #{tpu_custom_call.1} parent=1 // pred_fallthru
      _
    // Predicated region
    $region18: #{tpu_custom_call.1} parent=1 // pred_check
      _
    $region19: #{tpu_custom_call.1} parent=1 // pred_check_branch
      %37 = sbr.rel (0) target = $region21
    $region20: #{tpu_custom_call.1} parent=1 // pred_region
      %38 = dma.done [#allocation3], 384
    $region21: #{tpu_custom_call.1} parent=1 // pred_fallthru
      _
    // Predicated region
    $region22: #{tpu_custom_call.1} parent=1 // pred_check
      _
    $region23: #{tpu_custom_call.1} parent=1 // pred_check_branch
      %40 = sbr.rel (0) target = $region25
    $region24: #{tpu_custom_call.1} parent=1 // pred_region
      %41 = dma.done [#allocation6], 192
    $region25: #{tpu_custom_call.1} parent=1 // pred_fallthru
      _
    %v42 = vld [vmem:[%s3] sm:$0xf]
    %v43 = vld [vmem:[%s2] sm:$0xf]
    %v44 = vld [vmem:[#allocation2] sm:$0x3]
    %v45 = vld [vmem:[#allocation2 + $0x8] sm:$0x3]
    %v46 = vld [vmem:[#allocation2 + $0x10] sm:$0x3]
    %v47 = vld [vmem:[#allocation5] ss:$4 sm:$0x7]
    %v49 = vlaneseq
    %v50 = vshrl.u32 %v49, 7
    %v51 = vsub.s32 0, %v50
    %v52 = vrot.slane %v47, %v51
    %v53 = vlaneseq
    %v54 = vshrl.u32 %v53, 7
    %v55 = vsub.s32 1, %v54
    %v56 = vrot.slane %v47, %v55
    %v57 = vlaneseq
    %v58 = vshrl.u32 %v57, 7
    %v59 = vsub.s32 2, %v58
    %v60 = vrot.slane %v47, %v59
    %v64 = vmul.f32 %v44, %v52
    %v65 = vmul.f32 %v45, %v56
    %v66 = vmul.f32 %v46, %v60
    %68 = vset.pattern.permute.xlu0 0
    %69 = vperm.xlu0 %68, %v43
    %v70 = vpop.permute.xlu0 %69
    %v72 = vlaneseq
    %v73 = vshrl.u32 %v72, 7
    %v74 = vsub.s32 0, %v73
    %v75 = vrot.slane %v64, %v74
    %v76 = vlaneseq
    %v77 = vshrl.u32 %v76, 7
    %v78 = vsub.s32 0, %v77
    %v79 = vrot.slane %v65, %v78
    %v80 = vmul.f32 %v70, %v75
    %v81 = vmul.f32 %v70, %v79
    %v82 = vadd.f32 %v80, 0.0
    %v83 = vadd.f32 %v81, 0.0
    %84 = vset.pattern.permute.xlu0 1
    %85 = vperm.xlu0 %84, %v43
    %v86 = vpop.permute.xlu0 %85
    %v88 = vlaneseq
    %v89 = vshrl.u32 %v88, 7
    %v90 = vsub.s32 1, %v89
    %v91 = vrot.slane %v64, %v90
    %v92 = vlaneseq
    %v93 = vshrl.u32 %v92, 7
    %v94 = vsub.s32 1, %v93
    %v95 = vrot.slane %v65, %v94
    %v96 = vmul.f32 %v86, %v91
    %v97 = vmul.f32 %v86, %v95
    %v98 = vadd.f32 %v82, %v96
    %v99 = vadd.f32 %v83, %v97
    %100 = vset.pattern.permute.xlu0 2
    %101 = vperm.xlu0 %100, %v43
    %v102 = vpop.permute.xlu0 %101
    %v104 = vlaneseq
    %v105 = vshrl.u32 %v104, 7
    %v106 = vsub.s32 0, %v105
    %v107 = vrot.slane %v66, %v106
    %v108 = vmul.f32 %v102, %v75
    %v109 = vmul.f32 %v102, %v79
    %v110 = vmul.f32 %v102, %v107
    %114 = vrot.lane.b32.xlu0 %v108, 112
    %v115 = vpop.permute.xlu0 %114
    %116 = vrot.lane.b32.xlu0 %v109, 112
    %v117 = vpop.permute.xlu0 %116
    %118 = vrot.lane.b32.xlu0 %v110, 112
    %v119 = vpop.permute.xlu0 %118
    %vm120 = vcmask 916480
    %v121 = vsel %vm120, %v115, %v117
    %v122 = vsel %vm120, %v117, %v119
    %v125 = vadd.f32 %v98, %v121
    %v126 = vadd.f32 %v99, %v122
    %127 = vset.pattern.permute.xlu0 3
    %128 = vperm.xlu0 %127, %v43
    %v129 = vpop.permute.xlu0 %128
    %v131 = vlaneseq
    %v132 = vshrl.u32 %v131, 7
    %v133 = vsub.s32 1, %v132
    %v134 = vrot.slane %v66, %v133
    %v135 = vmul.f32 %v129, %v91
    %v136 = vmul.f32 %v129, %v95
    %v137 = vmul.f32 %v129, %v134
    %141 = vrot.lane.b32.xlu0 %v135, 112
    %v142 = vpop.permute.xlu0 %141
    %143 = vrot.lane.b32.xlu0 %v136, 112
    %v144 = vpop.permute.xlu0 %143
    %145 = vrot.lane.b32.xlu0 %v137, 112
    %v146 = vpop.permute.xlu0 %145
    %v147 = vsel %vm120, %v142, %v144
    %v148 = vsel %vm120, %v144, %v146
    %v151 = vadd.f32 %v125, %v147
    %v152 = vadd.f32 %v126, %v148
    %153 = vset.pattern.permute.xlu0 4
    %154 = vperm.xlu0 %153, %v43
    %v155 = vpop.permute.xlu0 %154
    %v157 = vmul.f32 %v155, %v75
    %v158 = vmul.f32 %v155, %v79
    %v159 = vmul.f32 %v155, %v107
    %163 = vrot.lane.b32.xlu0 %v157, 96
    %v164 = vpop.permute.xlu0 %163
    %165 = vrot.lane.b32.xlu0 %v158, 96
    %v166 = vpop.permute.xlu0 %165
    %167 = vrot.lane.b32.xlu0 %v159, 96
    %v168 = vpop.permute.xlu0 %167
    %vm169 = vcmask 785408
    %v170 = vsel %vm169, %v164, %v166
    %v171 = vsel %vm169, %v166, %v168
    %v174 = vadd.f32 %v151, %v170
    %v175 = vadd.f32 %v152, %v171
    %176 = vset.pattern.permute.xlu0 5
    %177 = vperm.xlu0 %176, %v43
    %v178 = vpop.permute.xlu0 %177
    %v180 = vmul.f32 %v178, %v91
    %v181 = vmul.f32 %v178, %v95
    %v182 = vmul.f32 %v178, %v134
    %186 = vrot.lane.b32.xlu0 %v180, 96
    %v187 = vpop.permute.xlu0 %186
    %188 = vrot.lane.b32.xlu0 %v181, 96
    %v189 = vpop.permute.xlu0 %188
    %190 = vrot.lane.b32.xlu0 %v182, 96
    %v191 = vpop.permute.xlu0 %190
    %v192 = vsel %vm169, %v187, %v189
    %v193 = vsel %vm169, %v189, %v191
    %v196 = vadd.f32 %v174, %v192
    %v197 = vadd.f32 %v175, %v193
    %198 = vset.pattern.permute.xlu0 6
    %199 = vperm.xlu0 %198, %v43
    %v200 = vpop.permute.xlu0 %199
    %v202 = vlaneseq
    %v203 = vshrl.u32 %v202, 7
    %v204 = vsub.s32 0, %v203
    %v205 = vrot.slane %v44, %v204
    %v206 = vlaneseq
    %v207 = vshrl.u32 %v206, 7
    %v208 = vsub.s32 0, %v207
    %v209 = vrot.slane %v45, %v208
    %v210 = vlaneseq
    %v211 = vshrl.u32 %v210, 7
    %v212 = vsub.s32 0, %v211
    %v213 = vrot.slane %v46, %v212
    %v214 = vmul.f32 %v200, %v205
    %v215 = vmul.f32 %v200, %v209
    %v216 = vmul.f32 %v200, %v213
    %220 = vrot.lane.b32.xlu0 %v214, 127
    %v221 = vpop.permute.xlu0 %220
    %222 = vrot.lane.b32.xlu0 %v215, 127
    %v223 = vpop.permute.xlu0 %222
    %224 = vrot.lane.b32.xlu0 %v216, 127
    %v225 = vpop.permute.xlu0 %224
    %vm226 = vcmask 1039360
    %v227 = vsel %vm226, %v221, %v223
    %v228 = vsel %vm226, %v223, %v225
    %v231 = vadd.f32 %v196, %v227
    %v232 = vadd.f32 %v197, %v228
    %233 = vset.pattern.permute.xlu0 7
    %234 = vperm.xlu0 %233, %v43
    %v235 = vpop.permute.xlu0 %234
    %v237 = vlaneseq
    %v238 = vshrl.u32 %v237, 7
    %v239 = vsub.s32 1, %v238
    %v240 = vrot.slane %v44, %v239
    %v241 = vlaneseq
    %v242 = vshrl.u32 %v241, 7
    %v243 = vsub.s32 1, %v242
    %v244 = vrot.slane %v45, %v243
    %v245 = vlaneseq
    %v246 = vshrl.u32 %v245, 7
    %v247 = vsub.s32 1, %v246
    %v248 = vrot.slane %v46, %v247
    %v249 = vmul.f32 %v235, %v240
    %v250 = vmul.f32 %v235, %v244
    %v251 = vmul.f32 %v235, %v248
    %255 = vrot.lane.b32.xlu0 %v249, 127
    %v256 = vpop.permute.xlu0 %255
    %257 = vrot.lane.b32.xlu0 %v250, 127
    %v258 = vpop.permute.xlu0 %257
    %259 = vrot.lane.b32.xlu0 %v251, 127
    %v260 = vpop.permute.xlu0 %259
    %v261 = vsel %vm226, %v256, %v258
    %v262 = vsel %vm226, %v258, %v260
    %v265 = vadd.f32 %v231, %v261
    %v266 = vadd.f32 %v232, %v262
    %267 = vset.pattern.permute.xlu0 8
    %268 = vperm.xlu0 %267, %v43
    %v269 = vpop.permute.xlu0 %268
    %v271 = vmul.f32 %v269, %v205
    %v272 = vmul.f32 %v269, %v209
    %v273 = vmul.f32 %v269, %v213
    %277 = vrot.lane.b32.xlu0 %v271, 111
    %v278 = vpop.permute.xlu0 %277
    %279 = vrot.lane.b32.xlu0 %v272, 111
    %v280 = vpop.permute.xlu0 %279
    %281 = vrot.lane.b32.xlu0 %v273, 111
    %v282 = vpop.permute.xlu0 %281
    %vm283 = vcmask 908288
    %v284 = vsel %vm283, %v278, %v280
    %v285 = vsel %vm283, %v280, %v282
    %v288 = vadd.f32 %v265, %v284
    %v289 = vadd.f32 %v266, %v285
    %290 = vset.pattern.permute.xlu0 9
    %291 = vperm.xlu0 %290, %v43
    %v292 = vpop.permute.xlu0 %291
    %v294 = vmul.f32 %v292, %v240
    %v295 = vmul.f32 %v292, %v244
    %v296 = vmul.f32 %v292, %v248
    %300 = vrot.lane.b32.xlu0 %v294, 111
    %v301 = vpop.permute.xlu0 %300
    %302 = vrot.lane.b32.xlu0 %v295, 111
    %v303 = vpop.permute.xlu0 %302
    %304 = vrot.lane.b32.xlu0 %v296, 111
    %v305 = vpop.permute.xlu0 %304
    %v306 = vsel %vm283, %v301, %v303
    %v307 = vsel %vm283, %v303, %v305
    %v310 = vadd.f32 %v288, %v306
    %v311 = vadd.f32 %v289, %v307
    %312 = vset.pattern.permute.xlu0 10
    %313 = vperm.xlu0 %312, %v43
    %v314 = vpop.permute.xlu0 %313
    %v316 = vmul.f32 %v314, %v205
    %v317 = vmul.f32 %v314, %v209
    %v318 = vmul.f32 %v314, %v213
    %322 = vrot.lane.b32.xlu0 %v316, 95
    %v323 = vpop.permute.xlu0 %322
    %324 = vrot.lane.b32.xlu0 %v317, 95
    %v325 = vpop.permute.xlu0 %324
    %326 = vrot.lane.b32.xlu0 %v318, 95
    %v327 = vpop.permute.xlu0 %326
    %vm328 = vcmask 777216
    %v329 = vsel %vm328, %v323, %v325
    %v330 = vsel %vm328, %v325, %v327
    %v333 = vadd.f32 %v310, %v329
    %v334 = vadd.f32 %v311, %v330
    %335 = vset.pattern.permute.xlu0 11
    %336 = vperm.xlu0 %335, %v43
    %v337 = vpop.permute.xlu0 %336
    %v339 = vmul.f32 %v337, %v240
    %v340 = vmul.f32 %v337, %v244
    %v341 = vmul.f32 %v337, %v248
    %345 = vrot.lane.b32.xlu0 %v339, 95
    %v346 = vpop.permute.xlu0 %345
    %347 = vrot.lane.b32.xlu0 %v340, 95
    %v348 = vpop.permute.xlu0 %347
    %349 = vrot.lane.b32.xlu0 %v341, 95
    %v350 = vpop.permute.xlu0 %349
    %v351 = vsel %vm328, %v346, %v348
    %v352 = vsel %vm328, %v348, %v350
    %v355 = vadd.f32 %v333, %v351
    %v356 = vadd.f32 %v334, %v352
    %s357 = scalar_lea.vmem [#allocation5], 2
    %v358 = vld [vmem:[%s357] ss:$4 sm:$0x7]
    %v360 = vlaneseq
    %v361 = vshrl.u32 %v360, 7
    %v362 = vsub.s32 0, %v361
    %v363 = vrot.slane %v358, %v362
    %v364 = vlaneseq
    %v365 = vshrl.u32 %v364, 7
    %v366 = vsub.s32 1, %v365
    %v367 = vrot.slane %v358, %v366
    %v368 = vlaneseq
    %v369 = vshrl.u32 %v368, 7
    %v370 = vsub.s32 2, %v369
    %v371 = vrot.slane %v358, %v370
    %372 = vrot.lane.b32.xlu0 %v363, 2
    %v373 = vpop.permute.xlu0 %372
    %374 = vrot.lane.b32.xlu0 %v367, 2
    %v375 = vpop.permute.xlu0 %374
    %376 = vrot.lane.b32.xlu0 %v371, 2
    %v377 = vpop.permute.xlu0 %376
    %vm378 = vcmask 15360
    %v379 = vsel %vm378, %v373, %v375
    %v380 = vsel %vm378, %v375, %v377
    %v384 = vmul.f32 %v44, %v373
    %v385 = vmul.f32 %v45, %v379
    %v386 = vmul.f32 %v46, %v380
    %387 = vset.pattern.permute.xlu0 12
    %388 = vperm.xlu0 %387, %v43
    %v389 = vpop.permute.xlu0 %388
    %v391 = vlaneseq
    %v392 = vshrl.u32 %v391, 7
    %v393 = vsub.s32 0, %v392
    %v394 = vrot.slane %v384, %v393
    %v395 = vlaneseq
    %v396 = vshrl.u32 %v395, 7
    %v397 = vsub.s32 0, %v396
    %v398 = vrot.slane %v385, %v397
    %v399 = vlaneseq
    %v400 = vshrl.u32 %v399, 7
    %v401 = vsub.s32 0, %v400
    %v402 = vrot.slane %v386, %v401
    %v403 = vmul.f32 %v389, %v394
    %v404 = vmul.f32 %v389, %v398
    %v405 = vmul.f32 %v389, %v402
    %409 = vrot.lane.b32.xlu0 %v403, 126
    %v410 = vpop.permute.xlu0 %409
    %411 = vrot.lane.b32.xlu0 %v404, 126
    %v412 = vpop.permute.xlu0 %411
    %413 = vrot.lane.b32.xlu0 %v405, 126
    %v414 = vpop.permute.xlu0 %413
    %vm415 = vcmask 1031168
    %v416 = vsel %vm415, %v410, %v412
    %v417 = vsel %vm415, %v412, %v414
    %v420 = vadd.f32 %v355, %v416
    %v421 = vadd.f32 %v356, %v417
    %422 = vset.pattern.permute.xlu0 13
    %423 = vperm.xlu0 %422, %v43
    %v424 = vpop.permute.xlu0 %423
    %v426 = vlaneseq
    %v427 = vshrl.u32 %v426, 7
    %v428 = vsub.s32 1, %v427
    %v429 = vrot.slane %v384, %v428
    %v430 = vlaneseq
    %v431 = vshrl.u32 %v430, 7
    %v432 = vsub.s32 1, %v431
    %v433 = vrot.slane %v385, %v432
    %v434 = vlaneseq
    %v435 = vshrl.u32 %v434, 7
    %v436 = vsub.s32 1, %v435
    %v437 = vrot.slane %v386, %v436
    %v438 = vmul.f32 %v424, %v429
    %v439 = vmul.f32 %v424, %v433
    %v440 = vmul.f32 %v424, %v437
    %444 = vrot.lane.b32.xlu0 %v438, 126
    %v445 = vpop.permute.xlu0 %444
    %446 = vrot.lane.b32.xlu0 %v439, 126
    %v447 = vpop.permute.xlu0 %446
    %448 = vrot.lane.b32.xlu0 %v440, 126
    %v449 = vpop.permute.xlu0 %448
    %v450 = vsel %vm415, %v445, %v447
    %v451 = vsel %vm415, %v447, %v449
    %v454 = vadd.f32 %v420, %v450
    %v455 = vadd.f32 %v421, %v451
    %456 = vset.pattern.permute.xlu0 14
    %457 = vperm.xlu0 %456, %v43
    %v458 = vpop.permute.xlu0 %457
    %v460 = vmul.f32 %v458, %v394
    %v461 = vmul.f32 %v458, %v398
    %v462 = vmul.f32 %v458, %v402
    %466 = vrot.lane.b32.xlu0 %v460, 110
    %v467 = vpop.permute.xlu0 %466
    %468 = vrot.lane.b32.xlu0 %v461, 110
    %v469 = vpop.permute.xlu0 %468
    %470 = vrot.lane.b32.xlu0 %v462, 110
    %v471 = vpop.permute.xlu0 %470
    %vm472 = vcmask 900096
    %v473 = vsel %vm472, %v467, %v469
    %v474 = vsel %vm472, %v469, %v471
    %v477 = vadd.f32 %v454, %v473
    %v478 = vadd.f32 %v455, %v474
    %479 = vset.pattern.permute.xlu0 15
    %480 = vperm.xlu0 %479, %v43
    %v481 = vpop.permute.xlu0 %480
    %v483 = vmul.f32 %v481, %v429
    %v484 = vmul.f32 %v481, %v433
    %v485 = vmul.f32 %v481, %v437
    %489 = vrot.lane.b32.xlu0 %v483, 110
    %v490 = vpop.permute.xlu0 %489
    %491 = vrot.lane.b32.xlu0 %v484, 110
    %v492 = vpop.permute.xlu0 %491
    %493 = vrot.lane.b32.xlu0 %v485, 110
    %v494 = vpop.permute.xlu0 %493
    %v495 = vsel %vm472, %v490, %v492
    %v496 = vsel %vm472, %v492, %v494
    %v499 = vadd.f32 %v477, %v495
    %v500 = vadd.f32 %v478, %v496
    %501 = vset.pattern.permute.xlu0 16
    %502 = vperm.xlu0 %501, %v43
    %v503 = vpop.permute.xlu0 %502
    %v505 = vmul.f32 %v503, %v394
    %v506 = vmul.f32 %v503, %v398
    %v507 = vmul.f32 %v503, %v402
    %511 = vrot.lane.b32.xlu0 %v505, 94
    %v512 = vpop.permute.xlu0 %511
    %513 = vrot.lane.b32.xlu0 %v506, 94
    %v514 = vpop.permute.xlu0 %513
    %515 = vrot.lane.b32.xlu0 %v507, 94
    %v516 = vpop.permute.xlu0 %515
    %vm517 = vcmask 769024
    %v518 = vsel %vm517, %v512, %v514
    %v519 = vsel %vm517, %v514, %v516
    %v522 = vadd.f32 %v499, %v518
    %v523 = vadd.f32 %v500, %v519
    %524 = vset.pattern.permute.xlu0 17
    %525 = vperm.xlu0 %524, %v43
    %v526 = vpop.permute.xlu0 %525
    %v528 = vmul.f32 %v526, %v429
    %v529 = vmul.f32 %v526, %v433
    %v530 = vmul.f32 %v526, %v437
    %534 = vrot.lane.b32.xlu0 %v528, 94
    %v535 = vpop.permute.xlu0 %534
    %536 = vrot.lane.b32.xlu0 %v529, 94
    %v537 = vpop.permute.xlu0 %536
    %538 = vrot.lane.b32.xlu0 %v530, 94
    %v539 = vpop.permute.xlu0 %538
    %v540 = vsel %vm517, %v535, %v537
    %v541 = vsel %vm517, %v537, %v539
    %v544 = vadd.f32 %v522, %v540
    %v545 = vadd.f32 %v523, %v541
    %547 = vset.pattern.permute.xlu0 0
    %548 = vperm.xlu0 %547, %v42
    %v549 = vpop.permute.xlu0 %548
    %v551 = vadd.f32 %v544, %v549
    %v552 = vadd.f32 %v545, %v549
    %553 = vst [vmem:[#allocation7] sm:$0xf] %v551
    %554 = vst [vmem:[#allocation7 + $0x8] sm:$0xf] %v552
    %v555 = vld [vmem:[#allocation2] sm:$0xc]
    %v556 = vld [vmem:[#allocation2 + $0x8] sm:$0xc]
    %v557 = vld [vmem:[#allocation2 + $0x10] sm:$0xc]
    %v558 = vld [vmem:[#allocation5] ss:$4 sm:$0x7]
    %v560 = vlaneseq
    %v561 = vshrl.u32 %v560, 7
    %v562 = vsub.s32 0, %v561
    %v563 = vrot.slane %v558, %v562
    %v564 = vlaneseq
    %v565 = vshrl.u32 %v564, 7
    %v566 = vsub.s32 1, %v565
    %v567 = vrot.slane %v558, %v566
    %v568 = vlaneseq
    %v569 = vshrl.u32 %v568, 7
    %v570 = vsub.s32 2, %v569
    %v571 = vrot.slane %v558, %v570
    %v575 = vmul.f32 %v555, %v563
    %v576 = vmul.f32 %v556, %v567
    %v577 = vmul.f32 %v557, %v571
    %v578 = vlaneseq
    %v579 = vshrl.u32 %v578, 7
    %v580 = vsub.s32 2, %v579
    %v581 = vrot.slane %v575, %v580
    %v582 = vlaneseq
    %v583 = vshrl.u32 %v582, 7
    %v584 = vsub.s32 2, %v583
    %v585 = vrot.slane %v576, %v584
    %v586 = vmul.f32 %v70, %v581
    %v587 = vmul.f32 %v70, %v585
    %v588 = vadd.f32 %v586, 0.0
    %v589 = vadd.f32 %v587, 0.0
    %v590 = vlaneseq
    %v591 = vshrl.u32 %v590, 7
    %v592 = vsub.s32 3, %v591
    %v593 = vrot.slane %v575, %v592
    %v594 = vlaneseq
    %v595 = vshrl.u32 %v594, 7
    %v596 = vsub.s32 3, %v595
    %v597 = vrot.slane %v576, %v596
    %v598 = vmul.f32 %v86, %v593
    %v599 = vmul.f32 %v86, %v597
    %v600 = vadd.f32 %v588, %v598
    %v601 = vadd.f32 %v589, %v599
    %v602 = vlaneseq
    %v603 = vshrl.u32 %v602, 7
    %v604 = vsub.s32 2, %v603
    %v605 = vrot.slane %v577, %v604
    %v606 = vmul.f32 %v102, %v581
    %v607 = vmul.f32 %v102, %v585
    %v608 = vmul.f32 %v102, %v605
    %612 = vrot.lane.b32.xlu0 %v606, 112
    %v613 = vpop.permute.xlu0 %612
    %614 = vrot.lane.b32.xlu0 %v607, 112
    %v615 = vpop.permute.xlu0 %614
    %616 = vrot.lane.b32.xlu0 %v608, 112
    %v617 = vpop.permute.xlu0 %616
    %v618 = vsel %vm120, %v613, %v615
    %v619 = vsel %vm120, %v615, %v617
    %v622 = vadd.f32 %v600, %v618
    %v623 = vadd.f32 %v601, %v619
    %v624 = vlaneseq
    %v625 = vshrl.u32 %v624, 7
    %v626 = vsub.s32 3, %v625
    %v627 = vrot.slane %v577, %v626
    %v628 = vmul.f32 %v129, %v593
    %v629 = vmul.f32 %v129, %v597
    %v630 = vmul.f32 %v129, %v627
    %634 = vrot.lane.b32.xlu0 %v628, 112
    %v635 = vpop.permute.xlu0 %634
    %636 = vrot.lane.b32.xlu0 %v629, 112
    %v637 = vpop.permute.xlu0 %636
    %638 = vrot.lane.b32.xlu0 %v630, 112
    %v639 = vpop.permute.xlu0 %638
    %v640 = vsel %vm120, %v635, %v637
    %v641 = vsel %vm120, %v637, %v639
    %v644 = vadd.f32 %v622, %v640
    %v645 = vadd.f32 %v623, %v641
    %v646 = vmul.f32 %v155, %v581
    %v647 = vmul.f32 %v155, %v585
    %v648 = vmul.f32 %v155, %v605
    %652 = vrot.lane.b32.xlu0 %v646, 96
    %v653 = vpop.permute.xlu0 %652
    %654 = vrot.lane.b32.xlu0 %v647, 96
    %v655 = vpop.permute.xlu0 %654
    %656 = vrot.lane.b32.xlu0 %v648, 96
    %v657 = vpop.permute.xlu0 %656
    %v658 = vsel %vm169, %v653, %v655
    %v659 = vsel %vm169, %v655, %v657
    %v662 = vadd.f32 %v644, %v658
    %v663 = vadd.f32 %v645, %v659
    %v664 = vmul.f32 %v178, %v593
    %v665 = vmul.f32 %v178, %v597
    %v666 = vmul.f32 %v178, %v627
    %670 = vrot.lane.b32.xlu0 %v664, 96
    %v671 = vpop.permute.xlu0 %670
    %672 = vrot.lane.b32.xlu0 %v665, 96
    %v673 = vpop.permute.xlu0 %672
    %674 = vrot.lane.b32.xlu0 %v666, 96
    %v675 = vpop.permute.xlu0 %674
    %v676 = vsel %vm169, %v671, %v673
    %v677 = vsel %vm169, %v673, %v675
    %v680 = vadd.f32 %v662, %v676
    %v681 = vadd.f32 %v663, %v677
    %v682 = vlaneseq
    %v683 = vshrl.u32 %v682, 7
    %v684 = vsub.s32 2, %v683
    %v685 = vrot.slane %v555, %v684
    %v686 = vlaneseq
    %v687 = vshrl.u32 %v686, 7
    %v688 = vsub.s32 2, %v687
    %v689 = vrot.slane %v556, %v688
    %v690 = vlaneseq
    %v691 = vshrl.u32 %v690, 7
    %v692 = vsub.s32 2, %v691
    %v693 = vrot.slane %v557, %v692
    %v694 = vmul.f32 %v200, %v685
    %v695 = vmul.f32 %v200, %v689
    %v696 = vmul.f32 %v200, %v693
    %700 = vrot.lane.b32.xlu0 %v694, 127
    %v701 = vpop.permute.xlu0 %700
    %702 = vrot.lane.b32.xlu0 %v695, 127
    %v703 = vpop.permute.xlu0 %702
    %704 = vrot.lane.b32.xlu0 %v696, 127
    %v705 = vpop.permute.xlu0 %704
    %v706 = vsel %vm226, %v701, %v703
    %v707 = vsel %vm226, %v703, %v705
    %v710 = vadd.f32 %v680, %v706
    %v711 = vadd.f32 %v681, %v707
    %v712 = vlaneseq
    %v713 = vshrl.u32 %v712, 7
    %v714 = vsub.s32 3, %v713
    %v715 = vrot.slane %v555, %v714
    %v716 = vlaneseq
    %v717 = vshrl.u32 %v716, 7
    %v718 = vsub.s32 3, %v717
    %v719 = vrot.slane %v556, %v718
    %v720 = vlaneseq
    %v721 = vshrl.u32 %v720, 7
    %v722 = vsub.s32 3, %v721
    %v723 = vrot.slane %v557, %v722
    %v724 = vmul.f32 %v235, %v715
    %v725 = vmul.f32 %v235, %v719
    %v726 = vmul.f32 %v235, %v723
    %730 = vrot.lane.b32.xlu0 %v724, 127
    %v731 = vpop.permute.xlu0 %730
    %732 = vrot.lane.b32.xlu0 %v725, 127
    %v733 = vpop.permute.xlu0 %732
    %734 = vrot.lane.b32.xlu0 %v726, 127
    %v735 = vpop.permute.xlu0 %734
    %v736 = vsel %vm226, %v731, %v733
    %v737 = vsel %vm226, %v733, %v735
    %v740 = vadd.f32 %v710, %v736
    %v741 = vadd.f32 %v711, %v737
    %v742 = vmul.f32 %v269, %v685
    %v743 = vmul.f32 %v269, %v689
    %v744 = vmul.f32 %v269, %v693
    %748 = vrot.lane.b32.xlu0 %v742, 111
    %v749 = vpop.permute.xlu0 %748
    %750 = vrot.lane.b32.xlu0 %v743, 111
    %v751 = vpop.permute.xlu0 %750
    %752 = vrot.lane.b32.xlu0 %v744, 111
    %v753 = vpop.permute.xlu0 %752
    %v754 = vsel %vm283, %v749, %v751
    %v755 = vsel %vm283, %v751, %v753
    %v758 = vadd.f32 %v740, %v754
    %v759 = vadd.f32 %v741, %v755
    %v760 = vmul.f32 %v292, %v715
    %v761 = vmul.f32 %v292, %v719
    %v762 = vmul.f32 %v292, %v723
    %766 = vrot.lane.b32.xlu0 %v760, 111
    %v767 = vpop.permute.xlu0 %766
    %768 = vrot.lane.b32.xlu0 %v761, 111
    %v769 = vpop.permute.xlu0 %768
    %770 = vrot.lane.b32.xlu0 %v762, 111
    %v771 = vpop.permute.xlu0 %770
    %v772 = vsel %vm283, %v767, %v769
    %v773 = vsel %vm283, %v769, %v771
    %v776 = vadd.f32 %v758, %v772
    %v777 = vadd.f32 %v759, %v773
    %v778 = vmul.f32 %v314, %v685
    %v779 = vmul.f32 %v314, %v689
    %v780 = vmul.f32 %v314, %v693
    %784 = vrot.lane.b32.xlu0 %v778, 95
    %v785 = vpop.permute.xlu0 %784
    %786 = vrot.lane.b32.xlu0 %v779, 95
    %v787 = vpop.permute.xlu0 %786
    %788 = vrot.lane.b32.xlu0 %v780, 95
    %v789 = vpop.permute.xlu0 %788
    %v790 = vsel %vm328, %v785, %v787
    %v791 = vsel %vm328, %v787, %v789
    %v794 = vadd.f32 %v776, %v790
    %v795 = vadd.f32 %v777, %v791
    %v796 = vmul.f32 %v337, %v715
    %v797 = vmul.f32 %v337, %v719
    %v798 = vmul.f32 %v337, %v723
    %802 = vrot.lane.b32.xlu0 %v796, 95
    %v803 = vpop.permute.xlu0 %802
    %804 = vrot.lane.b32.xlu0 %v797, 95
    %v805 = vpop.permute.xlu0 %804
    %806 = vrot.lane.b32.xlu0 %v798, 95
    %v807 = vpop.permute.xlu0 %806
    %v808 = vsel %vm328, %v803, %v805
    %v809 = vsel %vm328, %v805, %v807
    %v812 = vadd.f32 %v794, %v808
    %v813 = vadd.f32 %v795, %v809
    %v814 = vld [vmem:[%s357] ss:$4 sm:$0x7]
    %v816 = vlaneseq
    %v817 = vshrl.u32 %v816, 7
    %v818 = vsub.s32 0, %v817
    %v819 = vrot.slane %v814, %v818
    %v820 = vlaneseq
    %v821 = vshrl.u32 %v820, 7
    %v822 = vsub.s32 1, %v821
    %v823 = vrot.slane %v814, %v822
    %v824 = vlaneseq
    %v825 = vshrl.u32 %v824, 7
    %v826 = vsub.s32 2, %v825
    %v827 = vrot.slane %v814, %v826
    %828 = vrot.lane.b32.xlu0 %v819, 2
    %v829 = vpop.permute.xlu0 %828
    %830 = vrot.lane.b32.xlu0 %v823, 2
    %v831 = vpop.permute.xlu0 %830
    %832 = vrot.lane.b32.xlu0 %v827, 2
    %v833 = vpop.permute.xlu0 %832
    %v834 = vsel %vm378, %v829, %v831
    %v835 = vsel %vm378, %v831, %v833
    %v839 = vmul.f32 %v555, %v829
    %v840 = vmul.f32 %v556, %v834
    %v841 = vmul.f32 %v557, %v835
    %v842 = vlaneseq
    %v843 = vshrl.u32 %v842, 7
    %v844 = vsub.s32 2, %v843
    %v845 = vrot.slane %v839, %v844
    %v846 = vlaneseq
    %v847 = vshrl.u32 %v846, 7
    %v848 = vsub.s32 2, %v847
    %v849 = vrot.slane %v840, %v848
    %v850 = vlaneseq
    %v851 = vshrl.u32 %v850, 7
    %v852 = vsub.s32 2, %v851
    %v853 = vrot.slane %v841, %v852
    %v854 = vmul.f32 %v389, %v845
    %v855 = vmul.f32 %v389, %v849
    %v856 = vmul.f32 %v389, %v853
    %860 = vrot.lane.b32.xlu0 %v854, 126
    %v861 = vpop.permute.xlu0 %860
    %862 = vrot.lane.b32.xlu0 %v855, 126
    %v863 = vpop.permute.xlu0 %862
    %864 = vrot.lane.b32.xlu0 %v856, 126
    %v865 = vpop.permute.xlu0 %864
    %v866 = vsel %vm415, %v861, %v863
    %v867 = vsel %vm415, %v863, %v865
    %v870 = vadd.f32 %v812, %v866
    %v871 = vadd.f32 %v813, %v867
    %v872 = vlaneseq
    %v873 = vshrl.u32 %v872, 7
    %v874 = vsub.s32 3, %v873
    %v875 = vrot.slane %v839, %v874
    %v876 = vlaneseq
    %v877 = vshrl.u32 %v876, 7
    %v878 = vsub.s32 3, %v877
    %v879 = vrot.slane %v840, %v878
    %v880 = vlaneseq
    %v881 = vshrl.u32 %v880, 7
    %v882 = vsub.s32 3, %v881
    %v883 = vrot.slane %v841, %v882
    %v884 = vmul.f32 %v424, %v875
    %v885 = vmul.f32 %v424, %v879
    %v886 = vmul.f32 %v424, %v883
    %890 = vrot.lane.b32.xlu0 %v884, 126
    %v891 = vpop.permute.xlu0 %890
    %892 = vrot.lane.b32.xlu0 %v885, 126
    %v893 = vpop.permute.xlu0 %892
    %894 = vrot.lane.b32.xlu0 %v886, 126
    %v895 = vpop.permute.xlu0 %894
    %v896 = vsel %vm415, %v891, %v893
    %v897 = vsel %vm415, %v893, %v895
    %v900 = vadd.f32 %v870, %v896
    %v901 = vadd.f32 %v871, %v897
    %v902 = vmul.f32 %v458, %v845
    %v903 = vmul.f32 %v458, %v849
    %v904 = vmul.f32 %v458, %v853
    %908 = vrot.lane.b32.xlu0 %v902, 110
    %v909 = vpop.permute.xlu0 %908
    %910 = vrot.lane.b32.xlu0 %v903, 110
    %v911 = vpop.permute.xlu0 %910
    %912 = vrot.lane.b32.xlu0 %v904, 110
    %v913 = vpop.permute.xlu0 %912
    %v914 = vsel %vm472, %v909, %v911
    %v915 = vsel %vm472, %v911, %v913
    %v918 = vadd.f32 %v900, %v914
    %v919 = vadd.f32 %v901, %v915
    %v920 = vmul.f32 %v481, %v875
    %v921 = vmul.f32 %v481, %v879
    %v922 = vmul.f32 %v481, %v883
    %926 = vrot.lane.b32.xlu0 %v920, 110
    %v927 = vpop.permute.xlu0 %926
    %928 = vrot.lane.b32.xlu0 %v921, 110
    %v929 = vpop.permute.xlu0 %928
    %930 = vrot.lane.b32.xlu0 %v922, 110
    %v931 = vpop.permute.xlu0 %930
    %v932 = vsel %vm472, %v927, %v929
    %v933 = vsel %vm472, %v929, %v931
    %v936 = vadd.f32 %v918, %v932
    %v937 = vadd.f32 %v919, %v933
    %v938 = vmul.f32 %v503, %v845
    %v939 = vmul.f32 %v503, %v849
    %v940 = vmul.f32 %v503, %v853
    %944 = vrot.lane.b32.xlu0 %v938, 94
    %v945 = vpop.permute.xlu0 %944
    %946 = vrot.lane.b32.xlu0 %v939, 94
    %v947 = vpop.permute.xlu0 %946
    %948 = vrot.lane.b32.xlu0 %v940, 94
    %v949 = vpop.permute.xlu0 %948
    %v950 = vsel %vm517, %v945, %v947
    %v951 = vsel %vm517, %v947, %v949
    %v954 = vadd.f32 %v936, %v950
    %v955 = vadd.f32 %v937, %v951
    %v956 = vmul.f32 %v526, %v875
    %v957 = vmul.f32 %v526, %v879
    %v958 = vmul.f32 %v526, %v883
    %962 = vrot.lane.b32.xlu0 %v956, 94
    %v963 = vpop.permute.xlu0 %962
    %964 = vrot.lane.b32.xlu0 %v957, 94
    %v965 = vpop.permute.xlu0 %964
    %966 = vrot.lane.b32.xlu0 %v958, 94
    %v967 = vpop.permute.xlu0 %966
    %v968 = vsel %vm517, %v963, %v965
    %v969 = vsel %vm517, %v965, %v967
    %v972 = vadd.f32 %v954, %v968
    %v973 = vadd.f32 %v955, %v969
    %v974 = vadd.f32 %v972, %v549
    %v975 = vadd.f32 %v973, %v549
    %v978 = vrot.slane %v974, 4
    %v979 = vrot.slane %v975, 4
    %982 = vst [vmem:[#allocation7] sm:$0xf0] %v978
    %983 = vst [vmem:[#allocation7 + $0x8] sm:$0xf0] %v979
    %v984 = vld [vmem:[#allocation2] sm:$0x30]
    %v985 = vld [vmem:[#allocation2 + $0x8] sm:$0x30]
    %v986 = vld [vmem:[#allocation2 + $0x10] sm:$0x30]
    %v987 = vld [vmem:[#allocation5] ss:$4 sm:$0x7]
    %v989 = vlaneseq
    %v990 = vshrl.u32 %v989, 7
    %v991 = vsub.s32 0, %v990
    %v992 = vrot.slane %v987, %v991
    %v993 = vlaneseq
    %v994 = vshrl.u32 %v993, 7
    %v995 = vsub.s32 1, %v994
    %v996 = vrot.slane %v987, %v995
    %v997 = vlaneseq
    %v998 = vshrl.u32 %v997, 7
    %v999 = vsub.s32 2, %v998
    %v1000 = vrot.slane %v987, %v999
    %v1004 = vmul.f32 %v984, %v992
    %v1005 = vmul.f32 %v985, %v996
    %v1006 = vmul.f32 %v986, %v1000
    %v1007 = vlaneseq
    %v1008 = vshrl.u32 %v1007, 7
    %v1009 = vsub.s32 4, %v1008
    %v1010 = vrot.slane %v1004, %v1009
    %v1011 = vlaneseq
    %v1012 = vshrl.u32 %v1011, 7
    %v1013 = vsub.s32 4, %v1012
    %v1014 = vrot.slane %v1005, %v1013
    %v1015 = vmul.f32 %v70, %v1010
    %v1016 = vmul.f32 %v70, %v1014
    %v1017 = vadd.f32 %v1015, 0.0
    %v1018 = vadd.f32 %v1016, 0.0
    %v1019 = vlaneseq
    %v1020 = vshrl.u32 %v1019, 7
    %v1021 = vsub.s32 5, %v1020
    %v1022 = vrot.slane %v1004, %v1021
    %v1023 = vlaneseq
    %v1024 = vshrl.u32 %v1023, 7
    %v1025 = vsub.s32 5, %v1024
    %v1026 = vrot.slane %v1005, %v1025
    %v1027 = vmul.f32 %v86, %v1022
    %v1028 = vmul.f32 %v86, %v1026
    %v1029 = vadd.f32 %v1017, %v1027
    %v1030 = vadd.f32 %v1018, %v1028
    %v1031 = vlaneseq
    %v1032 = vshrl.u32 %v1031, 7
    %v1033 = vsub.s32 4, %v1032
    %v1034 = vrot.slane %v1006, %v1033
    %v1035 = vmul.f32 %v102, %v1010
    %v1036 = vmul.f32 %v102, %v1014
    %v1037 = vmul.f32 %v102, %v1034
    %1041 = vrot.lane.b32.xlu0 %v1035, 112
    %v1042 = vpop.permute.xlu0 %1041
    %1043 = vrot.lane.b32.xlu0 %v1036, 112
    %v1044 = vpop.permute.xlu0 %1043
    %1045 = vrot.lane.b32.xlu0 %v1037, 112
    %v1046 = vpop.permute.xlu0 %1045
    %v1047 = vsel %vm120, %v1042, %v1044
    %v1048 = vsel %vm120, %v1044, %v1046
    %v1051 = vadd.f32 %v1029, %v1047
    %v1052 = vadd.f32 %v1030, %v1048
    %v1053 = vlaneseq
    %v1054 = vshrl.u32 %v1053, 7
    %v1055 = vsub.s32 5, %v1054
    %v1056 = vrot.slane %v1006, %v1055
    %v1057 = vmul.f32 %v129, %v1022
    %v1058 = vmul.f32 %v129, %v1026
    %v1059 = vmul.f32 %v129, %v1056
    %1063 = vrot.lane.b32.xlu0 %v1057, 112
    %v1064 = vpop.permute.xlu0 %1063
    %1065 = vrot.lane.b32.xlu0 %v1058, 112
    %v1066 = vpop.permute.xlu0 %1065
    %1067 = vrot.lane.b32.xlu0 %v1059, 112
    %v1068 = vpop.permute.xlu0 %1067
    %v1069 = vsel %vm120, %v1064, %v1066
    %v1070 = vsel %vm120, %v1066, %v1068
    %v1073 = vadd.f32 %v1051, %v1069
    %v1074 = vadd.f32 %v1052, %v1070
    %v1075 = vmul.f32 %v155, %v1010
    %v1076 = vmul.f32 %v155, %v1014
    %v1077 = vmul.f32 %v155, %v1034
    %1081 = vrot.lane.b32.xlu0 %v1075, 96
    %v1082 = vpop.permute.xlu0 %1081
    %1083 = vrot.lane.b32.xlu0 %v1076, 96
    %v1084 = vpop.permute.xlu0 %1083
    %1085 = vrot.lane.b32.xlu0 %v1077, 96
    %v1086 = vpop.permute.xlu0 %1085
    %v1087 = vsel %vm169, %v1082, %v1084
    %v1088 = vsel %vm169, %v1084, %v1086
    %v1091 = vadd.f32 %v1073, %v1087
    %v1092 = vadd.f32 %v1074, %v1088
    %v1093 = vmul.f32 %v178, %v1022
    %v1094 = vmul.f32 %v178, %v1026
    %v1095 = vmul.f32 %v178, %v1056
    %1099 = vrot.lane.b32.xlu0 %v1093, 96
    %v1100 = vpop.permute.xlu0 %1099
    %1101 = vrot.lane.b32.xlu0 %v1094, 96
    %v1102 = vpop.permute.xlu0 %1101
    %1103 = vrot.lane.b32.xlu0 %v1095, 96
    %v1104 = vpop.permute.xlu0 %1103
    %v1105 = vsel %vm169, %v1100, %v1102
    %v1106 = vsel %vm169, %v1102, %v1104
    %v1109 = vadd.f32 %v1091, %v1105
    %v1110 = vadd.f32 %v1092, %v1106
    %v1111 = vlaneseq
    %v1112 = vshrl.u32 %v1111, 7
    %v1113 = vsub.s32 4, %v1112
    %v1114 = vrot.slane %v984, %v1113
    %v1115 = vlaneseq
    %v1116 = vshrl.u32 %v1115, 7
    %v1117 = vsub.s32 4, %v1116
    %v1118 = vrot.slane %v985, %v1117
    %v1119 = vlaneseq
    %v1120 = vshrl.u32 %v1119, 7
    %v1121 = vsub.s32 4, %v1120
    %v1122 = vrot.slane %v986, %v1121
    %v1123 = vmul.f32 %v200, %v1114
    %v1124 = vmul.f32 %v200, %v1118
    %v1125 = vmul.f32 %v200, %v1122
    %1129 = vrot.lane.b32.xlu0 %v1123, 127
    %v1130 = vpop.permute.xlu0 %1129
    %1131 = vrot.lane.b32.xlu0 %v1124, 127
    %v1132 = vpop.permute.xlu0 %1131
    %1133 = vrot.lane.b32.xlu0 %v1125, 127
    %v1134 = vpop.permute.xlu0 %1133
    %v1135 = vsel %vm226, %v1130, %v1132
    %v1136 = vsel %vm226, %v1132, %v1134
    %v1139 = vadd.f32 %v1109, %v1135
    %v1140 = vadd.f32 %v1110, %v1136
    %v1141 = vlaneseq
    %v1142 = vshrl.u32 %v1141, 7
    %v1143 = vsub.s32 5, %v1142
    %v1144 = vrot.slane %v984, %v1143
    %v1145 = vlaneseq
    %v1146 = vshrl.u32 %v1145, 7
    %v1147 = vsub.s32 5, %v1146
    %v1148 = vrot.slane %v985, %v1147
    %v1149 = vlaneseq
    %v1150 = vshrl.u32 %v1149, 7
    %v1151 = vsub.s32 5, %v1150
    %v1152 = vrot.slane %v986, %v1151
    %v1153 = vmul.f32 %v235, %v1144
    %v1154 = vmul.f32 %v235, %v1148
    %v1155 = vmul.f32 %v235, %v1152
    %1159 = vrot.lane.b32.xlu0 %v1153, 127
    %v1160 = vpop.permute.xlu0 %1159
    %1161 = vrot.lane.b32.xlu0 %v1154, 127
    %v1162 = vpop.permute.xlu0 %1161
    %1163 = vrot.lane.b32.xlu0 %v1155, 127
    %v1164 = vpop.permute.xlu0 %1163
    %v1165 = vsel %vm226, %v1160, %v1162
    %v1166 = vsel %vm226, %v1162, %v1164
    %v1169 = vadd.f32 %v1139, %v1165
    %v1170 = vadd.f32 %v1140, %v1166
    %v1171 = vmul.f32 %v269, %v1114
    %v1172 = vmul.f32 %v269, %v1118
    %v1173 = vmul.f32 %v269, %v1122
    %1177 = vrot.lane.b32.xlu0 %v1171, 111
    %v1178 = vpop.permute.xlu0 %1177
    %1179 = vrot.lane.b32.xlu0 %v1172, 111
    %v1180 = vpop.permute.xlu0 %1179
    %1181 = vrot.lane.b32.xlu0 %v1173, 111
    %v1182 = vpop.permute.xlu0 %1181
    %v1183 = vsel %vm283, %v1178, %v1180
    %v1184 = vsel %vm283, %v1180, %v1182
    %v1187 = vadd.f32 %v1169, %v1183
    %v1188 = vadd.f32 %v1170, %v1184
    %v1189 = vmul.f32 %v292, %v1144
    %v1190 = vmul.f32 %v292, %v1148
    %v1191 = vmul.f32 %v292, %v1152
    %1195 = vrot.lane.b32.xlu0 %v1189, 111
    %v1196 = vpop.permute.xlu0 %1195
    %1197 = vrot.lane.b32.xlu0 %v1190, 111
    %v1198 = vpop.permute.xlu0 %1197
    %1199 = vrot.lane.b32.xlu0 %v1191, 111
    %v1200 = vpop.permute.xlu0 %1199
    %v1201 = vsel %vm283, %v1196, %v1198
    %v1202 = vsel %vm283, %v1198, %v1200
    %v1205 = vadd.f32 %v1187, %v1201
    %v1206 = vadd.f32 %v1188, %v1202
    %v1207 = vmul.f32 %v314, %v1114
    %v1208 = vmul.f32 %v314, %v1118
    %v1209 = vmul.f32 %v314, %v1122
    %1213 = vrot.lane.b32.xlu0 %v1207, 95
    %v1214 = vpop.permute.xlu0 %1213
    %1215 = vrot.lane.b32.xlu0 %v1208, 95
    %v1216 = vpop.permute.xlu0 %1215
    %1217 = vrot.lane.b32.xlu0 %v1209, 95
    %v1218 = vpop.permute.xlu0 %1217
    %v1219 = vsel %vm328, %v1214, %v1216
    %v1220 = vsel %vm328, %v1216, %v1218
    %v1223 = vadd.f32 %v1205, %v1219
    %v1224 = vadd.f32 %v1206, %v1220
    %v1225 = vmul.f32 %v337, %v1144
    %v1226 = vmul.f32 %v337, %v1148
    %v1227 = vmul.f32 %v337, %v1152
    %1231 = vrot.lane.b32.xlu0 %v1225, 95
    %v1232 = vpop.permute.xlu0 %1231
    %1233 = vrot.lane.b32.xlu0 %v1226, 95
    %v1234 = vpop.permute.xlu0 %1233
    %1235 = vrot.lane.b32.xlu0 %v1227, 95
    %v1236 = vpop.permute.xlu0 %1235
    %v1237 = vsel %vm328, %v1232, %v1234
    %v1238 = vsel %vm328, %v1234, %v1236
    %v1241 = vadd.f32 %v1223, %v1237
    %v1242 = vadd.f32 %v1224, %v1238
    %v1243 = vld [vmem:[%s357] ss:$4 sm:$0x7]
    %v1245 = vlaneseq
    %v1246 = vshrl.u32 %v1245, 7
    %v1247 = vsub.s32 0, %v1246
    %v1248 = vrot.slane %v1243, %v1247
    %v1249 = vlaneseq
    %v1250 = vshrl.u32 %v1249, 7
    %v1251 = vsub.s32 1, %v1250
    %v1252 = vrot.slane %v1243, %v1251
    %v1253 = vlaneseq
    %v1254 = vshrl.u32 %v1253, 7
    %v1255 = vsub.s32 2, %v1254
    %v1256 = vrot.slane %v1243, %v1255
    %1257 = vrot.lane.b32.xlu0 %v1248, 2
    %v1258 = vpop.permute.xlu0 %1257
    %1259 = vrot.lane.b32.xlu0 %v1252, 2
    %v1260 = vpop.permute.xlu0 %1259
    %1261 = vrot.lane.b32.xlu0 %v1256, 2
    %v1262 = vpop.permute.xlu0 %1261
    %v1263 = vsel %vm378, %v1258, %v1260
    %v1264 = vsel %vm378, %v1260, %v1262
    %v1268 = vmul.f32 %v984, %v1258
    %v1269 = vmul.f32 %v985, %v1263
    %v1270 = vmul.f32 %v986, %v1264
    %v1271 = vlaneseq
    %v1272 = vshrl.u32 %v1271, 7
    %v1273 = vsub.s32 4, %v1272
    %v1274 = vrot.slane %v1268, %v1273
    %v1275 = vlaneseq
    %v1276 = vshrl.u32 %v1275, 7
    %v1277 = vsub.s32 4, %v1276
    %v1278 = vrot.slane %v1269, %v1277
    %v1279 = vlaneseq
    %v1280 = vshrl.u32 %v1279, 7
    %v1281 = vsub.s32 4, %v1280
    %v1282 = vrot.slane %v1270, %v1281
    %v1283 = vmul.f32 %v389, %v1274
    %v1284 = vmul.f32 %v389, %v1278
    %v1285 = vmul.f32 %v389, %v1282
    %1289 = vrot.lane.b32.xlu0 %v1283, 126
    %v1290 = vpop.permute.xlu0 %1289
    %1291 = vrot.lane.b32.xlu0 %v1284, 126
    %v1292 = vpop.permute.xlu0 %1291
    %1293 = vrot.lane.b32.xlu0 %v1285, 126
    %v1294 = vpop.permute.xlu0 %1293
    %v1295 = vsel %vm415, %v1290, %v1292
    %v1296 = vsel %vm415, %v1292, %v1294
    %v1299 = vadd.f32 %v1241, %v1295
    %v1300 = vadd.f32 %v1242, %v1296
    %v1301 = vlaneseq
    %v1302 = vshrl.u32 %v1301, 7
    %v1303 = vsub.s32 5, %v1302
    %v1304 = vrot.slane %v1268, %v1303
    %v1305 = vlaneseq
    %v1306 = vshrl.u32 %v1305, 7
    %v1307 = vsub.s32 5, %v1306
    %v1308 = vrot.slane %v1269, %v1307
    %v1309 = vlaneseq
    %v1310 = vshrl.u32 %v1309, 7
    %v1311 = vsub.s32 5, %v1310
    %v1312 = vrot.slane %v1270, %v1311
    %v1313 = vmul.f32 %v424, %v1304
    %v1314 = vmul.f32 %v424, %v1308
    %v1315 = vmul.f32 %v424, %v1312
    %1319 = vrot.lane.b32.xlu0 %v1313, 126
    %v1320 = vpop.permute.xlu0 %1319
    %1321 = vrot.lane.b32.xlu0 %v1314, 126
    %v1322 = vpop.permute.xlu0 %1321
    %1323 = vrot.lane.b32.xlu0 %v1315, 126
    %v1324 = vpop.permute.xlu0 %1323
    %v1325 = vsel %vm415, %v1320, %v1322
    %v1326 = vsel %vm415, %v1322, %v1324
    %v1329 = vadd.f32 %v1299, %v1325
    %v1330 = vadd.f32 %v1300, %v1326
    %v1331 = vmul.f32 %v458, %v1274
    %v1332 = vmul.f32 %v458, %v1278
    %v1333 = vmul.f32 %v458, %v1282
    %1337 = vrot.lane.b32.xlu0 %v1331, 110
    %v1338 = vpop.permute.xlu0 %1337
    %1339 = vrot.lane.b32.xlu0 %v1332, 110
    %v1340 = vpop.permute.xlu0 %1339
    %1341 = vrot.lane.b32.xlu0 %v1333, 110
    %v1342 = vpop.permute.xlu0 %1341
    %v1343 = vsel %vm472, %v1338, %v1340
    %v1344 = vsel %vm472, %v1340, %v1342
    %v1347 = vadd.f32 %v1329, %v1343
    %v1348 = vadd.f32 %v1330, %v1344
    %v1349 = vmul.f32 %v481, %v1304
    %v1350 = vmul.f32 %v481, %v1308
    %v1351 = vmul.f32 %v481, %v1312
    %1355 = vrot.lane.b32.xlu0 %v1349, 110
    %v1356 = vpop.permute.xlu0 %1355
    %1357 = vrot.lane.b32.xlu0 %v1350, 110
    %v1358 = vpop.permute.xlu0 %1357
    %1359 = vrot.lane.b32.xlu0 %v1351, 110
    %v1360 = vpop.permute.xlu0 %1359
    %v1361 = vsel %vm472, %v1356, %v1358
    %v1362 = vsel %vm472, %v1358, %v1360
    %v1365 = vadd.f32 %v1347, %v1361
    %v1366 = vadd.f32 %v1348, %v1362
    %v1367 = vmul.f32 %v503, %v1274
    %v1368 = vmul.f32 %v503, %v1278
    %v1369 = vmul.f32 %v503, %v1282
    %1373 = vrot.lane.b32.xlu0 %v1367, 94
    %v1374 = vpop.permute.xlu0 %1373
    %1375 = vrot.lane.b32.xlu0 %v1368, 94
    %v1376 = vpop.permute.xlu0 %1375
    %1377 = vrot.lane.b32.xlu0 %v1369, 94
    %v1378 = vpop.permute.xlu0 %1377
    %v1379 = vsel %vm517, %v1374, %v1376
    %v1380 = vsel %vm517, %v1376, %v1378
    %v1383 = vadd.f32 %v1365, %v1379
    %v1384 = vadd.f32 %v1366, %v1380
    %v1385 = vmul.f32 %v526, %v1304
    %v1386 = vmul.f32 %v526, %v1308
    %v1387 = vmul.f32 %v526, %v1312
    %1391 = vrot.lane.b32.xlu0 %v1385, 94
    %v1392 = vpop.permute.xlu0 %1391
    %1393 = vrot.lane.b32.xlu0 %v1386, 94
    %v1394 = vpop.permute.xlu0 %1393
    %1395 = vrot.lane.b32.xlu0 %v1387, 94
    %v1396 = vpop.permute.xlu0 %1395
    %v1397 = vsel %vm517, %v1392, %v1394
    %v1398 = vsel %vm517, %v1394, %v1396
    %v1401 = vadd.f32 %v1383, %v1397
    %v1402 = vadd.f32 %v1384, %v1398
    %v1403 = vadd.f32 %v1401, %v549
    %v1404 = vadd.f32 %v1402, %v549
    %1405 = vst [vmem:[#allocation7 + $0x10] sm:$0xf] %v1403
    %1406 = vst [vmem:[#allocation7 + $0x18] sm:$0xf] %v1404
    %v1407 = vld [vmem:[#allocation2] sm:$0xc0]
    %v1408 = vld [vmem:[#allocation2 + $0x8] sm:$0xc0]
    %v1409 = vld [vmem:[#allocation2 + $0x10] sm:$0xc0]
    %v1410 = vld [vmem:[#allocation5] ss:$4 sm:$0x7]
    %v1412 = vlaneseq
    %v1413 = vshrl.u32 %v1412, 7
    %v1414 = vsub.s32 0, %v1413
    %v1415 = vrot.slane %v1410, %v1414
    %v1416 = vlaneseq
    %v1417 = vshrl.u32 %v1416, 7
    %v1418 = vsub.s32 1, %v1417
    %v1419 = vrot.slane %v1410, %v1418
    %v1420 = vlaneseq
    %v1421 = vshrl.u32 %v1420, 7
    %v1422 = vsub.s32 2, %v1421
    %v1423 = vrot.slane %v1410, %v1422
    %v1427 = vmul.f32 %v1407, %v1415
    %v1428 = vmul.f32 %v1408, %v1419
    %v1429 = vmul.f32 %v1409, %v1423
    %v1430 = vlaneseq
    %v1431 = vshrl.u32 %v1430, 7
    %v1432 = vsub.s32 6, %v1431
    %v1433 = vrot.slane %v1427, %v1432
    %v1434 = vlaneseq
    %v1435 = vshrl.u32 %v1434, 7
    %v1436 = vsub.s32 6, %v1435
    %v1437 = vrot.slane %v1428, %v1436
    %v1438 = vmul.f32 %v70, %v1433
    %v1439 = vmul.f32 %v70, %v1437
    %v1440 = vadd.f32 %v1438, 0.0
    %v1441 = vadd.f32 %v1439, 0.0
    %v1442 = vlaneseq
    %v1443 = vshrl.u32 %v1442, 7
    %v1444 = vsub.s32 7, %v1443
    %v1445 = vrot.slane %v1427, %v1444
    %v1446 = vlaneseq
    %v1447 = vshrl.u32 %v1446, 7
    %v1448 = vsub.s32 7, %v1447
    %v1449 = vrot.slane %v1428, %v1448
    %v1450 = vmul.f32 %v86, %v1445
    %v1451 = vmul.f32 %v86, %v1449
    %v1452 = vadd.f32 %v1440, %v1450
    %v1453 = vadd.f32 %v1441, %v1451
    %v1454 = vlaneseq
    %v1455 = vshrl.u32 %v1454, 7
    %v1456 = vsub.s32 6, %v1455
    %v1457 = vrot.slane %v1429, %v1456
    %v1458 = vmul.f32 %v102, %v1433
    %v1459 = vmul.f32 %v102, %v1437
    %v1460 = vmul.f32 %v102, %v1457
    %1464 = vrot.lane.b32.xlu0 %v1458, 112
    %v1465 = vpop.permute.xlu0 %1464
    %1466 = vrot.lane.b32.xlu0 %v1459, 112
    %v1467 = vpop.permute.xlu0 %1466
    %1468 = vrot.lane.b32.xlu0 %v1460, 112
    %v1469 = vpop.permute.xlu0 %1468
    %v1470 = vsel %vm120, %v1465, %v1467
    %v1471 = vsel %vm120, %v1467, %v1469
    %v1474 = vadd.f32 %v1452, %v1470
    %v1475 = vadd.f32 %v1453, %v1471
    %v1476 = vlaneseq
    %v1477 = vshrl.u32 %v1476, 7
    %v1478 = vsub.s32 7, %v1477
    %v1479 = vrot.slane %v1429, %v1478
    %v1480 = vmul.f32 %v129, %v1445
    %v1481 = vmul.f32 %v129, %v1449
    %v1482 = vmul.f32 %v129, %v1479
    %1486 = vrot.lane.b32.xlu0 %v1480, 112
    %v1487 = vpop.permute.xlu0 %1486
    %1488 = vrot.lane.b32.xlu0 %v1481, 112
    %v1489 = vpop.permute.xlu0 %1488
    %1490 = vrot.lane.b32.xlu0 %v1482, 112
    %v1491 = vpop.permute.xlu0 %1490
    %v1492 = vsel %vm120, %v1487, %v1489
    %v1493 = vsel %vm120, %v1489, %v1491
    %v1496 = vadd.f32 %v1474, %v1492
    %v1497 = vadd.f32 %v1475, %v1493
    %v1498 = vmul.f32 %v155, %v1433
    %v1499 = vmul.f32 %v155, %v1437
    %v1500 = vmul.f32 %v155, %v1457
    %1504 = vrot.lane.b32.xlu0 %v1498, 96
    %v1505 = vpop.permute.xlu0 %1504
    %1506 = vrot.lane.b32.xlu0 %v1499, 96
    %v1507 = vpop.permute.xlu0 %1506
    %1508 = vrot.lane.b32.xlu0 %v1500, 96
    %v1509 = vpop.permute.xlu0 %1508
    %v1510 = vsel %vm169, %v1505, %v1507
    %v1511 = vsel %vm169, %v1507, %v1509
    %v1514 = vadd.f32 %v1496, %v1510
    %v1515 = vadd.f32 %v1497, %v1511
    %v1516 = vmul.f32 %v178, %v1445
    %v1517 = vmul.f32 %v178, %v1449
    %v1518 = vmul.f32 %v178, %v1479
    %1522 = vrot.lane.b32.xlu0 %v1516, 96
    %v1523 = vpop.permute.xlu0 %1522
    %1524 = vrot.lane.b32.xlu0 %v1517, 96
    %v1525 = vpop.permute.xlu0 %1524
    %1526 = vrot.lane.b32.xlu0 %v1518, 96
    %v1527 = vpop.permute.xlu0 %1526
    %v1528 = vsel %vm169, %v1523, %v1525
    %v1529 = vsel %vm169, %v1525, %v1527
    %v1532 = vadd.f32 %v1514, %v1528
    %v1533 = vadd.f32 %v1515, %v1529
    %v1534 = vlaneseq
    %v1535 = vshrl.u32 %v1534, 7
    %v1536 = vsub.s32 6, %v1535
    %v1537 = vrot.slane %v1407, %v1536
    %v1538 = vlaneseq
    %v1539 = vshrl.u32 %v1538, 7
    %v1540 = vsub.s32 6, %v1539
    %v1541 = vrot.slane %v1408, %v1540
    %v1542 = vlaneseq
    %v1543 = vshrl.u32 %v1542, 7
    %v1544 = vsub.s32 6, %v1543
    %v1545 = vrot.slane %v1409, %v1544
    %v1546 = vmul.f32 %v200, %v1537
    %v1547 = vmul.f32 %v200, %v1541
    %v1548 = vmul.f32 %v200, %v1545
    %1552 = vrot.lane.b32.xlu0 %v1546, 127
    %v1553 = vpop.permute.xlu0 %1552
    %1554 = vrot.lane.b32.xlu0 %v1547, 127
    %v1555 = vpop.permute.xlu0 %1554
    %1556 = vrot.lane.b32.xlu0 %v1548, 127
    %v1557 = vpop.permute.xlu0 %1556
    %v1558 = vsel %vm226, %v1553, %v1555
    %v1559 = vsel %vm226, %v1555, %v1557
    %v1562 = vadd.f32 %v1532, %v1558
    %v1563 = vadd.f32 %v1533, %v1559
    %v1564 = vlaneseq
    %v1565 = vshrl.u32 %v1564, 7
    %v1566 = vsub.s32 7, %v1565
    %v1567 = vrot.slane %v1407, %v1566
    %v1568 = vlaneseq
    %v1569 = vshrl.u32 %v1568, 7
    %v1570 = vsub.s32 7, %v1569
    %v1571 = vrot.slane %v1408, %v1570
    %v1572 = vlaneseq
    %v1573 = vshrl.u32 %v1572, 7
    %v1574 = vsub.s32 7, %v1573
    %v1575 = vrot.slane %v1409, %v1574
    %v1576 = vmul.f32 %v235, %v1567
    %v1577 = vmul.f32 %v235, %v1571
    %v1578 = vmul.f32 %v235, %v1575
    %1582 = vrot.lane.b32.xlu0 %v1576, 127
    %v1583 = vpop.permute.xlu0 %1582
    %1584 = vrot.lane.b32.xlu0 %v1577, 127
    %v1585 = vpop.permute.xlu0 %1584
    %1586 = vrot.lane.b32.xlu0 %v1578, 127
    %v1587 = vpop.permute.xlu0 %1586
    %v1588 = vsel %vm226, %v1583, %v1585
    %v1589 = vsel %vm226, %v1585, %v1587
    %v1592 = vadd.f32 %v1562, %v1588
    %v1593 = vadd.f32 %v1563, %v1589
    %v1594 = vmul.f32 %v269, %v1537
    %v1595 = vmul.f32 %v269, %v1541
    %v1596 = vmul.f32 %v269, %v1545
    %1600 = vrot.lane.b32.xlu0 %v1594, 111
    %v1601 = vpop.permute.xlu0 %1600
    %1602 = vrot.lane.b32.xlu0 %v1595, 111
    %v1603 = vpop.permute.xlu0 %1602
    %1604 = vrot.lane.b32.xlu0 %v1596, 111
    %v1605 = vpop.permute.xlu0 %1604
    %v1606 = vsel %vm283, %v1601, %v1603
    %v1607 = vsel %vm283, %v1603, %v1605
    %v1610 = vadd.f32 %v1592, %v1606
    %v1611 = vadd.f32 %v1593, %v1607
    %v1612 = vmul.f32 %v292, %v1567
    %v1613 = vmul.f32 %v292, %v1571
    %v1614 = vmul.f32 %v292, %v1575
    %1618 = vrot.lane.b32.xlu0 %v1612, 111
    %v1619 = vpop.permute.xlu0 %1618
    %1620 = vrot.lane.b32.xlu0 %v1613, 111
    %v1621 = vpop.permute.xlu0 %1620
    %1622 = vrot.lane.b32.xlu0 %v1614, 111
    %v1623 = vpop.permute.xlu0 %1622
    %v1624 = vsel %vm283, %v1619, %v1621
    %v1625 = vsel %vm283, %v1621, %v1623
    %v1628 = vadd.f32 %v1610, %v1624
    %v1629 = vadd.f32 %v1611, %v1625
    %v1630 = vmul.f32 %v314, %v1537
    %v1631 = vmul.f32 %v314, %v1541
    %v1632 = vmul.f32 %v314, %v1545
    %1636 = vrot.lane.b32.xlu0 %v1630, 95
    %v1637 = vpop.permute.xlu0 %1636
    %1638 = vrot.lane.b32.xlu0 %v1631, 95
    %v1639 = vpop.permute.xlu0 %1638
    %1640 = vrot.lane.b32.xlu0 %v1632, 95
    %v1641 = vpop.permute.xlu0 %1640
    %v1642 = vsel %vm328, %v1637, %v1639
    %v1643 = vsel %vm328, %v1639, %v1641
    %v1646 = vadd.f32 %v1628, %v1642
    %v1647 = vadd.f32 %v1629, %v1643
    %v1648 = vmul.f32 %v337, %v1567
    %v1649 = vmul.f32 %v337, %v1571
    %v1650 = vmul.f32 %v337, %v1575
    %1654 = vrot.lane.b32.xlu0 %v1648, 95
    %v1655 = vpop.permute.xlu0 %1654
    %1656 = vrot.lane.b32.xlu0 %v1649, 95
    %v1657 = vpop.permute.xlu0 %1656
    %1658 = vrot.lane.b32.xlu0 %v1650, 95
    %v1659 = vpop.permute.xlu0 %1658
    %v1660 = vsel %vm328, %v1655, %v1657
    %v1661 = vsel %vm328, %v1657, %v1659
    %v1664 = vadd.f32 %v1646, %v1660
    %v1665 = vadd.f32 %v1647, %v1661
    %v1666 = vld [vmem:[%s357] ss:$4 sm:$0x7]
    %v1668 = vlaneseq
    %v1669 = vshrl.u32 %v1668, 7
    %v1670 = vsub.s32 0, %v1669
    %v1671 = vrot.slane %v1666, %v1670
    %v1672 = vlaneseq
    %v1673 = vshrl.u32 %v1672, 7
    %v1674 = vsub.s32 1, %v1673
    %v1675 = vrot.slane %v1666, %v1674
    %v1676 = vlaneseq
    %v1677 = vshrl.u32 %v1676, 7
    %v1678 = vsub.s32 2, %v1677
    %v1679 = vrot.slane %v1666, %v1678
    %1680 = vrot.lane.b32.xlu0 %v1671, 2
    %v1681 = vpop.permute.xlu0 %1680
    %1682 = vrot.lane.b32.xlu0 %v1675, 2
    %v1683 = vpop.permute.xlu0 %1682
    %1684 = vrot.lane.b32.xlu0 %v1679, 2
    %v1685 = vpop.permute.xlu0 %1684
    %v1686 = vsel %vm378, %v1681, %v1683
    %v1687 = vsel %vm378, %v1683, %v1685
    %v1691 = vmul.f32 %v1407, %v1681
    %v1692 = vmul.f32 %v1408, %v1686
    %v1693 = vmul.f32 %v1409, %v1687
    %v1694 = vlaneseq
    %v1695 = vshrl.u32 %v1694, 7
    %v1696 = vsub.s32 6, %v1695
    %v1697 = vrot.slane %v1691, %v1696
    %v1698 = vlaneseq
    %v1699 = vshrl.u32 %v1698, 7
    %v1700 = vsub.s32 6, %v1699
    %v1701 = vrot.slane %v1692, %v1700
    %v1702 = vlaneseq
    %v1703 = vshrl.u32 %v1702, 7
    %v1704 = vsub.s32 6, %v1703
    %v1705 = vrot.slane %v1693, %v1704
    %v1706 = vmul.f32 %v389, %v1697
    %v1707 = vmul.f32 %v389, %v1701
    %v1708 = vmul.f32 %v389, %v1705
    %1712 = vrot.lane.b32.xlu0 %v1706, 126
    %v1713 = vpop.permute.xlu0 %1712
    %1714 = vrot.lane.b32.xlu0 %v1707, 126
    %v1715 = vpop.permute.xlu0 %1714
    %1716 = vrot.lane.b32.xlu0 %v1708, 126
    %v1717 = vpop.permute.xlu0 %1716
    %v1718 = vsel %vm415, %v1713, %v1715
    %v1719 = vsel %vm415, %v1715, %v1717
    %v1722 = vadd.f32 %v1664, %v1718
    %v1723 = vadd.f32 %v1665, %v1719
    %v1724 = vlaneseq
    %v1725 = vshrl.u32 %v1724, 7
    %v1726 = vsub.s32 7, %v1725
    %v1727 = vrot.slane %v1691, %v1726
    %v1728 = vlaneseq
    %v1729 = vshrl.u32 %v1728, 7
    %v1730 = vsub.s32 7, %v1729
    %v1731 = vrot.slane %v1692, %v1730
    %v1732 = vlaneseq
    %v1733 = vshrl.u32 %v1732, 7
    %v1734 = vsub.s32 7, %v1733
    %v1735 = vrot.slane %v1693, %v1734
    %v1736 = vmul.f32 %v424, %v1727
    %v1737 = vmul.f32 %v424, %v1731
    %v1738 = vmul.f32 %v424, %v1735
    %1742 = vrot.lane.b32.xlu0 %v1736, 126
    %v1743 = vpop.permute.xlu0 %1742
    %1744 = vrot.lane.b32.xlu0 %v1737, 126
    %v1745 = vpop.permute.xlu0 %1744
    %1746 = vrot.lane.b32.xlu0 %v1738, 126
    %v1747 = vpop.permute.xlu0 %1746
    %v1748 = vsel %vm415, %v1743, %v1745
    %v1749 = vsel %vm415, %v1745, %v1747
    %v1752 = vadd.f32 %v1722, %v1748
    %v1753 = vadd.f32 %v1723, %v1749
    %v1754 = vmul.f32 %v458, %v1697
    %v1755 = vmul.f32 %v458, %v1701
    %v1756 = vmul.f32 %v458, %v1705
    %1760 = vrot.lane.b32.xlu0 %v1754, 110
    %v1761 = vpop.permute.xlu0 %1760
    %1762 = vrot.lane.b32.xlu0 %v1755, 110
    %v1763 = vpop.permute.xlu0 %1762
    %1764 = vrot.lane.b32.xlu0 %v1756, 110
    %v1765 = vpop.permute.xlu0 %1764
    %v1766 = vsel %vm472, %v1761, %v1763
    %v1767 = vsel %vm472, %v1763, %v1765
    %v1770 = vadd.f32 %v1752, %v1766
    %v1771 = vadd.f32 %v1753, %v1767
    %v1772 = vmul.f32 %v481, %v1727
    %v1773 = vmul.f32 %v481, %v1731
    %v1774 = vmul.f32 %v481, %v1735
    %1778 = vrot.lane.b32.xlu0 %v1772, 110
    %v1779 = vpop.permute.xlu0 %1778
    %1780 = vrot.lane.b32.xlu0 %v1773, 110
    %v1781 = vpop.permute.xlu0 %1780
    %1782 = vrot.lane.b32.xlu0 %v1774, 110
    %v1783 = vpop.permute.xlu0 %1782
    %v1784 = vsel %vm472, %v1779, %v1781
    %v1785 = vsel %vm472, %v1781, %v1783
    %v1788 = vadd.f32 %v1770, %v1784
    %v1789 = vadd.f32 %v1771, %v1785
    %v1790 = vmul.f32 %v503, %v1697
    %v1791 = vmul.f32 %v503, %v1701
    %v1792 = vmul.f32 %v503, %v1705
    %1796 = vrot.lane.b32.xlu0 %v1790, 94
    %v1797 = vpop.permute.xlu0 %1796
    %1798 = vrot.lane.b32.xlu0 %v1791, 94
    %v1799 = vpop.permute.xlu0 %1798
    %1800 = vrot.lane.b32.xlu0 %v1792, 94
    %v1801 = vpop.permute.xlu0 %1800
    %v1802 = vsel %vm517, %v1797, %v1799
    %v1803 = vsel %vm517, %v1799, %v1801
    %v1806 = vadd.f32 %v1788, %v1802
    %v1807 = vadd.f32 %v1789, %v1803
    %v1808 = vmul.f32 %v526, %v1727
    %v1809 = vmul.f32 %v526, %v1731
    %v1810 = vmul.f32 %v526, %v1735
    %1814 = vrot.lane.b32.xlu0 %v1808, 94
    %v1815 = vpop.permute.xlu0 %1814
    %1816 = vrot.lane.b32.xlu0 %v1809, 94
    %v1817 = vpop.permute.xlu0 %1816
    %1818 = vrot.lane.b32.xlu0 %v1810, 94
    %v1819 = vpop.permute.xlu0 %1818
    %v1820 = vsel %vm517, %v1815, %v1817
    %v1821 = vsel %vm517, %v1817, %v1819
    %v1824 = vadd.f32 %v1806, %v1820
    %v1825 = vadd.f32 %v1807, %v1821
    %v1826 = vadd.f32 %v1824, %v549
    %v1827 = vadd.f32 %v1825, %v549
    %v1830 = vrot.slane %v1826, 4
    %v1831 = vrot.slane %v1827, 4
    %1834 = vst [vmem:[#allocation7 + $0x10] sm:$0xf0] %v1830
    %1835 = vst [vmem:[#allocation7 + $0x18] sm:$0xf0] %v1831
    // Predicated region
    $region26: #{tpu_custom_call.1} parent=1 // pred_check
      _
    $region27: #{tpu_custom_call.1} parent=1 // pred_check_branch
      %1837 = sbr.rel (0) target = $region29
    $region28: #{tpu_custom_call.1} parent=1 // pred_region
      %s1839 = ssub.s32 512, 512
      %1840 = vsyncadd [#allocation4], %s1839
      %s1841 = sshll.u32 [#allocation7], 4
      %s1842 = int_to_ptr.vmem [resolvable:$true] %s1841
      %1847 = dma.vmem_to_hbm [thread:$0]  %s1842, 512, %s4, [#allocation4], 256, 256, 16
    $region29: #{tpu_custom_call.1} parent=1 // pred_fallthru
      _
    // Predicated region
    $region30: #{tpu_custom_call.1} parent=1 // pred_check
      _
    $region31: #{tpu_custom_call.1} parent=1 // pred_check_branch
      %1849 = sbr.rel (0) target = $region33
    $region32: #{tpu_custom_call.1} parent=1 // pred_region
      %1850 = dma.done [#allocation4], 512
    $region33: #{tpu_custom_call.1} parent=1 // pred_fallthru
      _
    %1851 = vsyncpa [#allocation3], 1
    %1852 = vsyncpa [#allocation6], 1
    %1853 = vsyncpa [#allocation4], 1

</llo_original>
